<compile_context>
chip_gen: v7x
topology: tpu7x:2x2x1
jax: 0.10.0
libtpu: 0.0.40
codegen_flags: <defaults>
</compile_context>

<pallas_src>
import functools

import jax
import jax.numpy as jnp
from jax.experimental import pallas as pl
from jax.experimental.pallas import tpu as pltpu


def _round_up(x, m):
    return (x + m - 1) // m * m


def _vanilla_clip_kernel(patches_ref, w_ref, b_ref, txt_ref, anchors_ref, out_ref,
                         *, dot_precision):
    """One [K1, TM] column-tile of patchified pixels -> [1, TM] expected counts.

    Column-major layout: reductions run over the short sublane axis (D or B)
    and the output block is lane-dense.
    """
    # Fused (patch-embed conv ∘ 1x1 projection) as a single MXU matmul:
    #   proj_t[D, TM] = W_fused^T @ patches_block + b_fused^T
    proj_t = jnp.dot(w_ref[...], patches_ref[...],
                     preferred_element_type=jnp.float32,
                     precision=dot_precision) + b_ref[...]

    # F.normalize(image_features, p=2, dim=-1): v / max(||v||, 1e-12), per
    # spatial column.  Exact sqrt + divide (kernel is DMA-bound; accuracy
    # matters more than the EUP slot here).
    n2 = jnp.sum(proj_t * proj_t, axis=0, keepdims=True)             # [1, TM]
    inv_norm = 1.0 / jnp.maximum(jnp.sqrt(n2), 1e-12)                # [1, TM]

    # logits[b, m] = logit_scale.exp() * <txt_norm_b, img_norm_m>
    #             = (txt_scaled @ proj_t)[b, m] * inv_norm[m]
    # (scale + text normalization folded into txt_scaled in the wrapper; the
    #  per-column inv_norm commutes with this tiny [B, D] x [D, TM] matmul.)
    logits = jnp.dot(txt_ref[...], proj_t,
                     preferred_element_type=jnp.float32,
                     precision=jax.lax.Precision.HIGHEST) * inv_norm  # [B, TM]

    # Softmax over the B bins (sublane axis) fused with the expectation:
    #   exp_count[m] = sum_b softmax(logits[:, m])_b * anchor_b
    m = jnp.max(logits, axis=0, keepdims=True)                        # [1, TM]
    e = jnp.exp(logits - m)                                           # [B, TM]
    num = jnp.sum(e * anchors_ref[...], axis=0, keepdims=True)        # [1, TM]
    den = jnp.sum(e, axis=0, keepdims=True)                           # [1, TM]
    out_ref[...] = num / den                                          # lane-dense store


def vanilla_clip_forward(x, params, *, block_cols=1024, matmul_dtype=jnp.bfloat16):
    """x: [N, Cin, H, W] float32 (NCHW, as in PyTorch).  Returns [N, 1, Hp, Wp].

    block_cols: spatial tile width (lane axis); must be a multiple of 128.
    matmul_dtype: dtype of the big MXU operands.  bfloat16 is the default on
        all generations (halves the dominant HBM stream; accumulation and all
        elementwise work stay float32).  Use jnp.float32 for bit-accurate
        checks, or jnp.float8_e4m3fn on v7x behind an accuracy gate.
    """
    assert block_cols % 128 == 0, "block_cols must be a multiple of 128 (lane axis)"
    N, Cin, H, W = x.shape
    R = params["reduction"]
    Hp, Wp = H // R, W // R
    K1 = Cin * R * R
    M = N * Hp * Wp
    hi = jax.lax.Precision.HIGHEST

    # ---- loop-invariant parameter prep (frozen; hoisted out of the kernel) ----
    # Fuse patch-embed conv with the 1x1 projection (both linear, no act
    # between); HIGHEST precision so the fusion is exact w.r.t. the unfused module.
    w_fused = jnp.dot(params["w_emb"], params["w_proj"], precision=hi)          # [K1, D]
    b_fused = jnp.dot(params["b_emb"], params["w_proj"], precision=hi) \
        + params["b_proj"]                                                      # [1, D]
    # Pre-normalize the frozen text features and fold in exp(logit_scale):
    #   scale * (img @ txt.T) == img @ (scale * txt).T
    txt = params["text_features"]
    txt = txt / jnp.maximum(jnp.linalg.norm(txt, axis=-1, keepdims=True), 1e-12)
    txt_scaled = (jnp.exp(params["logit_scale"][0, 0]) * txt).astype(jnp.float32)
    anchors_col = params["anchor_points"].reshape(-1, 1).astype(jnp.float32)    # [B, 1]
    D = w_fused.shape[1]
    B = txt_scaled.shape[0]

    # ---- patchify NCHW -> column-major [K1, M] in the MXU operand dtype ----
    # Cast FIRST so the staging transpose and the pad below move half (bf16)
    # or a quarter (fp8) of the bytes; XLA fuses the pad into the same copy.
    patches_t = (x.astype(matmul_dtype)
                  .reshape(N, Cin, Hp, R, Wp, R)
                  .transpose(1, 3, 5, 0, 2, 4)
                  .reshape(K1, M))

    # ---- tile the spatial (lane) axis; pad to a lane-aligned multiple ----
    # Cap tm at ceil(M/2) (rounded to 128) so the "parallel" grid has >= 2
    # tiles whenever M allows it: both v7x TensorCores get work.
    m_ceil = _round_up(M, 128)
    tm_cap = max(128, _round_up(m_ceil // 2, 128))
    tm = min(block_cols, m_ceil, tm_cap)
    m_pad = _round_up(M, tm)
    if m_pad != M:
        patches_t = jnp.pad(patches_t, ((0, 0), (0, m_pad - M)))

    w_fused_t = w_fused.T.astype(matmul_dtype)         # [D, K1], resident
    b_fused_t = b_fused.T.astype(jnp.float32)          # [D, 1]

    dot_precision = hi if matmul_dtype == jnp.float32 else jax.lax.Precision.DEFAULT
    kernel = functools.partial(_vanilla_clip_kernel, dot_precision=dot_precision)

    grid = (m_pad // tm,)
    out = pl.pallas_call(
        kernel,
        out_shape=jax.ShapeDtypeStruct((1, m_pad), jnp.float32),
        grid_spec=pltpu.PrefetchScalarGridSpec(
            num_scalar_prefetch=0,
            grid=grid,
            in_specs=[
                # streamed [K1, tm] patch columns (double-buffered by Pallas)
                pl.BlockSpec((K1, tm), lambda i: (0, i)),
                # loop-invariant operands: constant index_map -> fetched once
                pl.BlockSpec((D, K1), lambda i: (0, 0)),   # fused weight (resident)
                pl.BlockSpec((D, 1), lambda i: (0, 0)),    # fused bias
                pl.BlockSpec((B, D), lambda i: (0, 0)),    # scale * normalized text
                pl.BlockSpec((B, 1), lambda i: (0, 0)),    # anchor points
            ],
            out_specs=pl.BlockSpec((1, tm), lambda i: (0, i)),
        ),
        compiler_params=pltpu.CompilerParams(
            dimension_semantics=("parallel",),   # megacore: split M-tiles across TCs
            # VMEM budget: 2*K1*tm*size(matmul_dtype) + D*tm*4 + small resident
            # operands; ~12 MiB at real CLIP sizes (K1~768 bf16, D=512, tm=2048),
            # so 32 MiB is comfortable on v5e/v6e (128 MiB) and v7x (64 MiB).
            vmem_limit_bytes=32 * 1024 * 1024,
        ),
    )(patches_t, w_fused_t, b_fused_t, txt_scaled, anchors_col)

    # [1, m_pad] -> drop padding -> NCHW [N, 1, Hp, Wp] (matches module output).
    return out[0, :M].reshape(N, Hp, Wp)[:, None, :, :]


def reference_forward(x, params):
    """Pure-JAX reference mirroring the PyTorch forward semantics (fp32, full precision)."""
    hi = jax.lax.Precision.HIGHEST
    N, Cin, H, W = x.shape
    R = params["reduction"]
    Hp, Wp = H // R, W // R
    patches = (x.reshape(N, Cin, Hp, R, Wp, R)
                .transpose(0, 2, 4, 1, 3, 5)
                .reshape(N * Hp * Wp, Cin * R * R))
    feat = jnp.dot(patches, params["w_emb"], precision=hi) + params["b_emb"]
    proj = jnp.dot(feat, params["w_proj"], precision=hi) + params["b_proj"]
    img = proj / jnp.maximum(
        jnp.linalg.norm(proj, axis=-1, keepdims=True), 1e-12)
    txt = params["text_features"]
    txt = txt / jnp.maximum(jnp.linalg.norm(txt, axis=-1, keepdims=True), 1e-12)
    logits = jnp.exp(params["logit_scale"][0, 0]) * jnp.dot(img, txt.T, precision=hi)
    probs = jax.nn.softmax(logits, axis=-1)
    exp = jnp.sum(probs * params["anchor_points"], axis=-1, keepdims=True)
    return exp.reshape(N, Hp, Wp, 1).transpose(0, 3, 1, 2)


if __name__ == "__main__":
    key = jax.random.PRNGKey(0)
    k_x, k_emb, k_bemb, k_proj, k_bproj, k_txt = jax.random.split(key, 6)

    # Small, module-consistent shapes.  Chosen so the padded spatial axis
    # splits into 2 lane-aligned tiles (exercises the multi-tile grid + pad).
    N, Cin, H, W = 2, 4, 64, 48        # input image (NCHW)
    R = 4                              # encoder reduction (patch stride)
    C = 64                             # backbone output channels
    D = 32                             # clip_embed_dim (C != D -> projection conv)
    bins = [(0.0, 0.0), (1.0, 1.0), (2.0, 2.0), (3.0, 100.0)]
    anchor_points = [0.0, 1.0, 2.0, 3.5]
    B = len(bins)

    params = {
        "reduction": R,
        # image-encoder stand-in: Conv2d(Cin, C, kernel=R, stride=R), flattened
        "w_emb": (0.05 * jax.random.normal(k_emb, (Cin * R * R, C))).astype(jnp.float32),
        "b_emb": (0.01 * jax.random.normal(k_bemb, (1, C))).astype(jnp.float32),
        # projection: Conv2d(C, D, kernel_size=1), flattened to [C, D]
        "w_proj": (0.05 * jax.random.normal(k_proj, (C, D))).astype(jnp.float32),
        "b_proj": (0.01 * jax.random.normal(k_bproj, (1, D))).astype(jnp.float32),
        # frozen text encoder output (precomputed at __init__ time in the module)
        "text_features": jax.random.normal(k_txt, (B, D)).astype(jnp.float32),
        # anchor_points.view(1, -1, 1, 1) -> flat row in this layout
        "anchor_points": jnp.asarray(anchor_points, jnp.float32).reshape(1, B),
        # logit_scale = log(1/0.07)
        "logit_scale": jnp.full((1, 1), jnp.log(1.0 / 0.07), jnp.float32),
    }

    x = jax.random.normal(k_x, (N, Cin, H, W), dtype=jnp.float32)

    ref = reference_forward(x, params)

    # fp32 MXU operands + HIGHEST precision everywhere: tight check against
    # the module-semantics reference.
    out = vanilla_clip_forward(x, params, matmul_dtype=jnp.float32)
    jax.block_until_ready(out)
    assert out.shape == (N, 1, H // R, W // R)
    assert jnp.allclose(out, ref, atol=5e-3, rtol=5e-3)

    # bf16 MXU operands (the performance default on all generations): loose
    # sanity check only, since bf16 inputs legitimately perturb the logits
    # before the softmax (validate MAE/RMSE end-to-end for a trained head).
    out_bf16 = vanilla_clip_forward(x, params)   # matmul_dtype=bfloat16 default
    jax.block_until_ready(out_bf16)
    assert out_bf16.shape == (N, 1, H // R, W // R)
    assert bool(jnp.all(jnp.isfinite(out_bf16)))
    assert jnp.allclose(out_bf16, ref, atol=0.25, rtol=0.25)

    print("KERNEL_OK")
</pallas_src>

<mosaic_0001>
module attributes {stable_mosaic.version = 11 : i64} {
  func.func @_vanilla_clip_kernel(%arg0: i32, %arg1: memref<64x256xf32, #tpu.memory_space<vmem>>, %arg2: memref<32x64xf32, #tpu.memory_space<vmem>>, %arg3: memref<32x1xf32, #tpu.memory_space<vmem>>, %arg4: memref<4x32xf32, #tpu.memory_space<vmem>>, %arg5: memref<4x1xf32, #tpu.memory_space<vmem>>, %arg6: memref<1x256xf32, #tpu.memory_space<vmem>>) attributes {dimension_semantics = [#tpu.dimension_semantics<parallel>], iteration_bounds = array<i64: 2>, scalar_prefetch = 0 : i64, scratch_operands = 0 : i64, tpu.core_type = #tpu.core_type<tc>, window_params = [{transform_indices = @transform_0, window_bounds = array<i64: 64, 256>}, {pipeline_mode = #tpu.pipeline_mode<synchronous>, transform_indices = @transform_1, window_bounds = array<i64: 32, 64>}, {pipeline_mode = #tpu.pipeline_mode<synchronous>, transform_indices = @transform_2, window_bounds = array<i64: 32, 1>}, {pipeline_mode = #tpu.pipeline_mode<synchronous>, transform_indices = @transform_3, window_bounds = array<i64: 4, 32>}, {pipeline_mode = #tpu.pipeline_mode<synchronous>, transform_indices = @transform_4, window_bounds = array<i64: 4, 1>}, {transform_indices = @transform_5, window_bounds = array<i64: 1, 256>}]} {
    %c0 = arith.constant 0 : index
    %c0_0 = arith.constant 0 : index
    %0 = vector.load %arg2[%c0, %c0_0] : memref<32x64xf32, #tpu.memory_space<vmem>>, vector<32x64xf32>
    %c0_1 = arith.constant 0 : index
    %c0_2 = arith.constant 0 : index
    %1 = vector.load %arg1[%c0_1, %c0_2] : memref<64x256xf32, #tpu.memory_space<vmem>>, vector<64x256xf32>
    %cst = arith.constant dense<0.000000e+00> : vector<32x256xf32>
    %2 = tpu.matmul %0, %1, %cst {dimension_numbers = #tpu.dot_dimension_numbers<[1], [0], [0], [1], [0, 0, 1, 1], [], []>, precision = #tpu.contract_precision<fp32>} : vector<32x64xf32>, vector<64x256xf32>, vector<32x256xf32> -> vector<32x256xf32>
    %c0_3 = arith.constant 0 : index
    %c0_4 = arith.constant 0 : index
    %3 = vector.load %arg3[%c0_3, %c0_4] : memref<32x1xf32, #tpu.memory_space<vmem>>, vector<32x1xf32>
    %4 = vector.broadcast %3 : vector<32x1xf32> to vector<32x256xf32>
    %5 = arith.addf %2, %4 : vector<32x256xf32>
    %6 = arith.mulf %5, %5 : vector<32x256xf32>
    %cst_5 = arith.constant dense<0.000000e+00> : vector<256xf32>
    %7 = vector.multi_reduction <add>, %6, %cst_5 [0] : vector<32x256xf32> to vector<256xf32>
    %8 = vector.shape_cast %7 : vector<256xf32> to vector<1x256xf32>
    %9 = math.sqrt %8 : vector<1x256xf32>
    %cst_6 = arith.constant 9.99999996E-13 : f32
    %10 = vector.broadcast %cst_6 : f32 to vector<1x256xf32>
    %11 = arith.maximumf %9, %10 : vector<1x256xf32>
    %cst_7 = arith.constant 1.000000e+00 : f32
    %12 = vector.broadcast %cst_7 : f32 to vector<1x256xf32>
    %13 = arith.divf %12, %11 : vector<1x256xf32>
    %c0_8 = arith.constant 0 : index
    %c0_9 = arith.constant 0 : index
    %14 = vector.load %arg4[%c0_8, %c0_9] : memref<4x32xf32, #tpu.memory_space<vmem>>, vector<4x32xf32>
    %cst_10 = arith.constant dense<0.000000e+00> : vector<4x256xf32>
    %15 = tpu.matmul %14, %5, %cst_10 {dimension_numbers = #tpu.dot_dimension_numbers<[1], [0], [0], [1], [0, 0, 1, 1], [], []>, precision = #tpu.contract_precision<fp32>} : vector<4x32xf32>, vector<32x256xf32>, vector<4x256xf32> -> vector<4x256xf32>
    %16 = vector.broadcast %13 : vector<1x256xf32> to vector<4x256xf32>
    %17 = arith.mulf %15, %16 : vector<4x256xf32>
    %cst_11 = arith.constant dense<0xFF800000> : vector<256xf32>
    %18 = vector.multi_reduction <maximumf>, %17, %cst_11 [0] : vector<4x256xf32> to vector<256xf32>
    %19 = vector.shape_cast %18 : vector<256xf32> to vector<1x256xf32>
    %20 = vector.broadcast %19 : vector<1x256xf32> to vector<4x256xf32>
    %21 = arith.subf %17, %20 : vector<4x256xf32>
    %22 = math.exp %21 : vector<4x256xf32>
    %c0_12 = arith.constant 0 : index
    %c0_13 = arith.constant 0 : index
    %23 = vector.load %arg5[%c0_12, %c0_13] : memref<4x1xf32, #tpu.memory_space<vmem>>, vector<4x1xf32>
    %24 = vector.broadcast %23 : vector<4x1xf32> to vector<4x256xf32>
    %25 = arith.mulf %22, %24 : vector<4x256xf32>
    %cst_14 = arith.constant dense<0.000000e+00> : vector<256xf32>
    %26 = vector.multi_reduction <add>, %25, %cst_14 [0] : vector<4x256xf32> to vector<256xf32>
    %27 = vector.shape_cast %26 : vector<256xf32> to vector<1x256xf32>
    %cst_15 = arith.constant dense<0.000000e+00> : vector<256xf32>
    %28 = vector.multi_reduction <add>, %22, %cst_15 [0] : vector<4x256xf32> to vector<256xf32>
    %29 = vector.shape_cast %28 : vector<256xf32> to vector<1x256xf32>
    %30 = arith.divf %27, %29 : vector<1x256xf32>
    %c0_16 = arith.constant 0 : index
    %c0_17 = arith.constant 0 : index
    %31 = vector.load %arg6[%c0_16, %c0_17] : memref<1x256xf32, #tpu.memory_space<vmem>>, vector<1x256xf32>
    tpu.vector_store %arg6[%c0_16, %c0_17], %30 {strides = array<i32>} : memref<1x256xf32, #tpu.memory_space<vmem>>, vector<1x256xf32>,
    return
  }
  func.func @transform_0(%arg0: i32) -> (i32, i32) {
    %c0_i32 = arith.constant 0 : i32
    %c0_i32_0 = arith.constant 0 : i32
    return %c0_i32, %arg0 : i32, i32
  }
  func.func @transform_1(%arg0: i32) -> (i32, i32) {
    %c0_i32 = arith.constant 0 : i32
    %c0_i32_0 = arith.constant 0 : i32
    %c0_i32_1 = arith.constant 0 : i32
    return %c0_i32, %c0_i32_0 : i32, i32
  }
  func.func @transform_2(%arg0: i32) -> (i32, i32) {
    %c0_i32 = arith.constant 0 : i32
    %c0_i32_0 = arith.constant 0 : i32
    %c0_i32_1 = arith.constant 0 : i32
    return %c0_i32, %c0_i32_0 : i32, i32
  }
  func.func @transform_3(%arg0: i32) -> (i32, i32) {
    %c0_i32 = arith.constant 0 : i32
    %c0_i32_0 = arith.constant 0 : i32
    %c0_i32_1 = arith.constant 0 : i32
    return %c0_i32, %c0_i32_0 : i32, i32
  }
  func.func @transform_4(%arg0: i32) -> (i32, i32) {
    %c0_i32 = arith.constant 0 : i32
    %c0_i32_0 = arith.constant 0 : i32
    %c0_i32_1 = arith.constant 0 : i32
    return %c0_i32, %c0_i32_0 : i32, i32
  }
  func.func @transform_5(%arg0: i32) -> (i32, i32) {
    %c0_i32 = arith.constant 0 : i32
    %c0_i32_0 = arith.constant 0 : i32
    return %c0_i32, %arg0 : i32, i32
  }
}

</mosaic_0001>

<llo_original>
// kernel: tpu_custom_call.1
$region0: #{tpu_custom_call.1}
  #allocation0 [shape = 'u32[]', space=smem, size = 0x4, offset = 0x4, fixed_abs, tag = 'smem constant byte address 0x4 - core index']
  #allocation1 [shape = 'u32[144,128]{1,0:T(1,128)}', space=vmem, size = 0x12000, scoped, tag = 'internal scratch']
  %s0 = inlined_call_operand.hbm [shape: f32[64,512], index: 0, kind: input, shape index: {}]
  %s1 = inlined_call_operand.vmem [shape: f32[32,64], index: 1, kind: input, shape index: {}]
  %s2 = inlined_call_operand.vmem [shape: f32[32,1], index: 2, kind: input, shape index: {}]
  %s3 = inlined_call_operand.vmem [shape: f32[4,32], index: 3, kind: input, shape index: {}]
  %s4 = inlined_call_operand.vmem [shape: f32[4,1], index: 4, kind: input, shape index: {}]
  %s5 = inlined_call_operand.hbm [shape: f32[1,512], index: 5, kind: output, shape index: {}]
  %s6 = sld [smem:[#allocation0]]
  $region57: #{tpu_custom_call.1} parent=0
    _
  %s8 = ssub.s32 1, %s6
  %s9 = scalar_select 0, %s8, %s6
  $region1: #{tpu_custom_call.1} parent=0
    #allocation2 [shape = 'u8[131072]{0}', space=vmem, size = 0x20000, scoped, tag = 'input window, operand 0']
    #allocation3 [shape = 's32[2]{0}', space=sflag, size = 0x8, scoped, tag = 'scoped memory for tpu_custom_call.1']
    #allocation4 [shape = 's32[2]{0}', space=sflag, size = 0x8, scoped, tag = 'scoped memory for tpu_custom_call.1']
    #allocation5 [shape = 'u8[2048]{0}', space=vmem, size = 0x800, scoped, tag = 'output window, operand 0']
    %10 = vsyncpa [#allocation3], 0
    %s11 = scalar_lea.sflag [#allocation3], 1
    %12 = vsyncpa %s11, 0
    %13 = vsyncpa [#allocation4], 0
    %s14 = scalar_lea.sflag [#allocation4], 1
    %15 = vsyncpa %s14, 0
    loop: start=0, step=1, limit=4
    $region2: #{tpu_custom_call.1} parent=1 // loop_pre_header
      _
    $region3: #{tpu_custom_call.1} parent=1 // loop_header
      %s17 = sphi 0, %s21
      %p18 = scmp.ge.s32.totalorder %s17, 4
      %s27 = sphi 0, %s29
      %s30 = sphi 0, %s27
      %s31 = sphi 0, %s30
      %s47 = sphi 0, %s31
      %s51 = sphi 0, %s51
      %s53 = sphi 0, %s51
      %s54 = sphi 0, %s53
      %s68 = sphi 0, %s54
      %s72 = sphi 0, %s72
      %s74 = sphi 0, %s72
      %s75 = sphi 0, %s74
      %s89 = sphi 0, %s75
      %s93 = sphi 0, %s93
      %s95 = sphi 0, %s93
      %s96 = sphi 0, %s95
      %s110 = sphi 0, %s96
      %s114 = sphi 0, %s114
      %s116 = sphi 0, %s114
      %s117 = sphi 0, %s116
      %s131 = sphi 0, %s117
      %s137 = sphi 0, %s139
      %s140 = sphi 0, %s137
      %s141 = sphi 0, %s140
      %s157 = sphi 0, %s141
    $region4: #{tpu_custom_call.1} parent=1 // loop_header_branch
      %20 = sbr.rel (%p18) target = $region8
    $region5: #{tpu_custom_call.1} parent=1 // loop_body
      %s22 = ssub.s32 %s17, 1
      %s23 = ssub.s32 %s17, 2
      %s24 = sadd.s32 %s17, 1
      %s25 = ssub.s32 %s17, %s24
      %p26 = scmp.eq.s32.totalorder %s25, 0
      %s28 = sadd.s32 %s27, 1
      %s29 = scalar_select %p26, %s27, %s28
      %p32 = pneg %p26
      %p33 = scmp.eq.s32.totalorder %s17, 1
      %p34 = por %p32, %p33
      %p35 = scmp.ne.s32.totalorder %s27, %s30
      %p36 = scmp.eq.s32.totalorder %s17, 0
      %p37 = por %p35, %p36
      %p38 = scmp.ne.s32.totalorder %s27, %s30
      %p39 = scmp.eq.s32.totalorder %s22, 1
      %p40 = por %p38, %p39
      %p41 = scmp.ne.s32.totalorder %s30, %s31
      %p42 = scmp.eq.s32.totalorder %s22, 0
      %p43 = por %p41, %p42
      %p44 = scmp.ne.s32.totalorder %s30, %s31
      %p45 = scmp.eq.s32.totalorder %s23, 1
      %p46 = por %p44, %p45
      %p48 = scmp.ne.s32.totalorder %s31, %s47
      %p49 = scmp.eq.s32.totalorder %s23, 0
      %p50 = por %p48, %p49
      %s52 = sadd.s32 %s51, 1
      %p55 = scmp.eq.s32.totalorder %s17, 1
      %p56 = scmp.ne.s32.totalorder %s51, %s53
      %p57 = scmp.eq.s32.totalorder %s17, 0
      %p58 = por %p56, %p57
      %p59 = scmp.ne.s32.totalorder %s51, %s53
      %p60 = scmp.eq.s32.totalorder %s22, 1
      %p61 = por %p59, %p60
      %p62 = scmp.ne.s32.totalorder %s53, %s54
      %p63 = scmp.eq.s32.totalorder %s22, 0
      %p64 = por %p62, %p63
      %p65 = scmp.ne.s32.totalorder %s53, %s54
      %p66 = scmp.eq.s32.totalorder %s23, 1
      %p67 = por %p65, %p66
      %p69 = scmp.ne.s32.totalorder %s54, %s68
      %p70 = scmp.eq.s32.totalorder %s23, 0
      %p71 = por %p69, %p70
      %s73 = sadd.s32 %s72, 1
      %p76 = scmp.eq.s32.totalorder %s17, 1
      %p77 = scmp.ne.s32.totalorder %s72, %s74
      %p78 = scmp.eq.s32.totalorder %s17, 0
      %p79 = por %p77, %p78
      %p80 = scmp.ne.s32.totalorder %s72, %s74
      %p81 = scmp.eq.s32.totalorder %s22, 1
      %p82 = por %p80, %p81
      %p83 = scmp.ne.s32.totalorder %s74, %s75
      %p84 = scmp.eq.s32.totalorder %s22, 0
      %p85 = por %p83, %p84
      %p86 = scmp.ne.s32.totalorder %s74, %s75
      %p87 = scmp.eq.s32.totalorder %s23, 1
      %p88 = por %p86, %p87
      %p90 = scmp.ne.s32.totalorder %s75, %s89
      %p91 = scmp.eq.s32.totalorder %s23, 0
      %p92 = por %p90, %p91
      %s94 = sadd.s32 %s93, 1
      %p97 = scmp.eq.s32.totalorder %s17, 1
      %p98 = scmp.ne.s32.totalorder %s93, %s95
      %p99 = scmp.eq.s32.totalorder %s17, 0
      %p100 = por %p98, %p99
      %p101 = scmp.ne.s32.totalorder %s93, %s95
      %p102 = scmp.eq.s32.totalorder %s22, 1
      %p103 = por %p101, %p102
      %p104 = scmp.ne.s32.totalorder %s95, %s96
      %p105 = scmp.eq.s32.totalorder %s22, 0
      %p106 = por %p104, %p105
      %p107 = scmp.ne.s32.totalorder %s95, %s96
      %p108 = scmp.eq.s32.totalorder %s23, 1
      %p109 = por %p107, %p108
      %p111 = scmp.ne.s32.totalorder %s96, %s110
      %p112 = scmp.eq.s32.totalorder %s23, 0
      %p113 = por %p111, %p112
      %s115 = sadd.s32 %s114, 1
      %p118 = scmp.eq.s32.totalorder %s17, 1
      %p119 = scmp.ne.s32.totalorder %s114, %s116
      %p120 = scmp.eq.s32.totalorder %s17, 0
      %p121 = por %p119, %p120
      %p122 = scmp.ne.s32.totalorder %s114, %s116
      %p123 = scmp.eq.s32.totalorder %s22, 1
      %p124 = por %p122, %p123
      %p125 = scmp.ne.s32.totalorder %s116, %s117
      %p126 = scmp.eq.s32.totalorder %s22, 0
      %p127 = por %p125, %p126
      %p128 = scmp.ne.s32.totalorder %s116, %s117
      %p129 = scmp.eq.s32.totalorder %s23, 1
      %p130 = por %p128, %p129
      %p132 = scmp.ne.s32.totalorder %s117, %s131
      %p133 = scmp.eq.s32.totalorder %s23, 0
      %p134 = por %p132, %p133
      %s135 = ssub.s32 %s17, %s24
      %p136 = scmp.eq.s32.totalorder %s135, 0
      %s138 = sadd.s32 %s137, 1
      %s139 = scalar_select %p136, %s137, %s138
      %p142 = pneg %p136
      %p143 = scmp.eq.s32.totalorder %s17, 1
      %p144 = por %p142, %p143
      %p145 = scmp.ne.s32.totalorder %s137, %s140
      %p146 = scmp.eq.s32.totalorder %s17, 0
      %p147 = por %p145, %p146
      %p148 = scmp.ne.s32.totalorder %s137, %s140
      %p149 = scmp.eq.s32.totalorder %s22, 1
      %p150 = por %p148, %p149
      %p151 = scmp.ne.s32.totalorder %s140, %s141
      %p152 = scmp.eq.s32.totalorder %s22, 0
      %p153 = por %p151, %p152
      %p154 = scmp.ne.s32.totalorder %s140, %s141
      %p155 = scmp.eq.s32.totalorder %s23, 1
      %p156 = por %p154, %p155
      %p158 = scmp.ne.s32.totalorder %s141, %s157
      %p159 = scmp.eq.s32.totalorder %s23, 0
      %p160 = por %p158, %p159
      %p161 = scmp.le.s32.totalorder 1, %s17
      %p162 = scmp.lt.s32.totalorder %s17, 3
      %p163 = pnand %p161, %p162
      %p164 = pneg %p163
      // Predicated region
      $region9: #{tpu_custom_call.1} parent=5 // pred_check
        _
      $region10: #{tpu_custom_call.1} parent=5 // pred_check_branch
        %166 = sbr.rel (%p163) target = $region12
      $region11: #{tpu_custom_call.1} parent=5 // pred_region
        %s167 = ssub.s32 %s17, 1
        // Predicated region
        $region13: #{tpu_custom_call.1} parent=11 // pred_check
          %p168 = pneg %p64
        $region14: #{tpu_custom_call.1} parent=11 // pred_check_branch
          %170 = sbr.rel (%p168) target = $region16
        $region15: #{tpu_custom_call.1} parent=11 // pred_region
          _
        $region16: #{tpu_custom_call.1} parent=11 // pred_fallthru
          _
        // Predicated region
        $region17: #{tpu_custom_call.1} parent=11 // pred_check
          %p171 = pneg %p85
        $region18: #{tpu_custom_call.1} parent=11 // pred_check_branch
          %173 = sbr.rel (%p171) target = $region20
        $region19: #{tpu_custom_call.1} parent=11 // pred_region
          _
        $region20: #{tpu_custom_call.1} parent=11 // pred_fallthru
          _
        // Predicated region
        $region21: #{tpu_custom_call.1} parent=11 // pred_check
          %p174 = pneg %p106
        $region22: #{tpu_custom_call.1} parent=11 // pred_check_branch
          %176 = sbr.rel (%p174) target = $region24
        $region23: #{tpu_custom_call.1} parent=11 // pred_region
          _
        $region24: #{tpu_custom_call.1} parent=11 // pred_fallthru
          _
        // Predicated region
        $region25: #{tpu_custom_call.1} parent=11 // pred_check
          %p177 = pneg %p127
        $region26: #{tpu_custom_call.1} parent=11 // pred_check_branch
          %179 = sbr.rel (%p177) target = $region28
        $region27: #{tpu_custom_call.1} parent=11 // pred_region
          _
        $region28: #{tpu_custom_call.1} parent=11 // pred_fallthru
          _
      $region12: #{tpu_custom_call.1} parent=5 // pred_fallthru
        _
      %p180 = scmp.lt.s32.totalorder %s17, 2
      // Predicated region
      $region29: #{tpu_custom_call.1} parent=5 // pred_check
        %p181 = pneg %p180
      $region30: #{tpu_custom_call.1} parent=5 // pred_check_branch
        %183 = sbr.rel (%p181) target = $region32
      $region31: #{tpu_custom_call.1} parent=5 // pred_region
        // Predicated region
        $region33: #{tpu_custom_call.1} parent=31 // pred_check
          %p184 = pneg %p37
        $region34: #{tpu_custom_call.1} parent=31 // pred_check_branch
          %186 = sbr.rel (%p184) target = $region36
        $region35: #{tpu_custom_call.1} parent=31 // pred_region
          %s187 = sand.u32 %s27, 1
          %s188 = scalar_lea.sflag [#allocation3], %s187
          %s189 = sand.u32 %s27, 1
          %s190 = smul.addr %s189, 128
          %s191 = scalar_lea.vmem [#allocation2], %s190
          %s192 = smul.u32 2, %s17
          %s194 = ssub.s32 2048, 2048
          %195 = vsyncadd %s188, %s194
          %s196 = smul.addr %s192, 128
          %s197 = scalar_lea.hbm %s0, %s196
          %s198 = sshll.u32 %s191, 4
          %s199 = int_to_ptr.vmem [resolvable:$true] %s198
          %204 = dma.hbm_to_vmem [thread:$0]  %s197, 2048, %s199, %s188, 512, 256, 16
        $region36: #{tpu_custom_call.1} parent=31 // pred_fallthru
          _
      $region32: #{tpu_custom_call.1} parent=5 // pred_fallthru
        _
      %p205 = scmp.le.s32.totalorder 1, %s17
      %p206 = scmp.lt.s32.totalorder %s17, 3
      %p207 = pnand %p205, %p206
      %p208 = pneg %p207
      // Predicated region
      $region37: #{tpu_custom_call.1} parent=5 // pred_check
        _
      $region38: #{tpu_custom_call.1} parent=5 // pred_check_branch
        %210 = sbr.rel (%p207) target = $region40
      $region39: #{tpu_custom_call.1} parent=5 // pred_region
        %s211 = ssub.s32 %s17, 1
        %s212 = sand.u32 %s30, 1
        %s213 = scalar_lea.sflag [#allocation3], %s212
        %s214 = sand.u32 %s30, 1
        %s215 = smul.addr %s214, 128
        %s216 = scalar_lea.vmem [#allocation2], %s215
        // Predicated region
        $region41: #{tpu_custom_call.1} parent=39 // pred_check
          %p217 = pneg %p43
        $region42: #{tpu_custom_call.1} parent=39 // pred_check_branch
          %219 = sbr.rel (%p217) target = $region44
        $region43: #{tpu_custom_call.1} parent=39 // pred_region
          %220 = dma.done %s213, 2048
        $region44: #{tpu_custom_call.1} parent=39 // pred_fallthru
          _
        %s221 = sand.u32 %s30, 1
        %s222 = scalar_lea.sflag [#allocation3], %s221
        %s223 = sand.u32 %s30, 1
        %s224 = smul.addr %s223, 128
        %s225 = scalar_lea.vmem [#allocation2], %s224
        %p226 = pneg %p43
        %p227 = pneg %p40
        %p228 = pneg %p64
        %p229 = pneg %p61
        %p230 = pneg %p85
        %p231 = pneg %p82
        %p232 = pneg %p106
        %p233 = pneg %p103
        %p234 = pneg %p127
        %p235 = pneg %p124
        %p236 = pneg %p153
        %p237 = pneg %p150
        %s238 = sand.u32 %s140, 1
        %s239 = scalar_lea.sflag [#allocation4], %s238
        %s240 = sand.u32 %s140, 1
        %s241 = smul.addr %s240, 2
        %s242 = scalar_lea.vmem [#allocation5], %s241
        %s243 = smul.u32 2, %s22
        %s244 = smul.u32 2, %s22
        %v245 = vld [vmem:[%s1] sm:$0xff]
        %v246 = vld [vmem:[%s1 + $0x8] sm:$0xff]
        %v247 = vld [vmem:[%s1 + $0x10] sm:$0xff]
        %v248 = vld [vmem:[%s1 + $0x18] sm:$0xff]
        %v249 = vld [vmem:[%s216] sm:$0xff]
        %v250 = vld [vmem:[%s216 + $0x8] sm:$0xff]
        %v251 = vld [vmem:[%s216 + $0x10] sm:$0xff]
        %v252 = vld [vmem:[%s216 + $0x18] sm:$0xff]
        %v253 = vld [vmem:[%s216 + $0x20] sm:$0xff]
        %v254 = vld [vmem:[%s216 + $0x28] sm:$0xff]
        %v255 = vld [vmem:[%s216 + $0x30] sm:$0xff]
        %v256 = vld [vmem:[%s216 + $0x38] sm:$0xff]
        %v257 = vld [vmem:[%s216 + $0x40] sm:$0xff]
        %v258 = vld [vmem:[%s216 + $0x48] sm:$0xff]
        %v259 = vld [vmem:[%s216 + $0x50] sm:$0xff]
        %v260 = vld [vmem:[%s216 + $0x58] sm:$0xff]
        %v261 = vld [vmem:[%s216 + $0x60] sm:$0xff]
        %v262 = vld [vmem:[%s216 + $0x68] sm:$0xff]
        %v263 = vld [vmem:[%s216 + $0x70] sm:$0xff]
        %v264 = vld [vmem:[%s216 + $0x78] sm:$0xff]
        %v265 = vld [vmem:[%s2] sm:$0xff]
        %v266 = vld [vmem:[%s2 + $0x8] sm:$0xff]
        %v267 = vld [vmem:[%s2 + $0x10] sm:$0xff]
        %v268 = vld [vmem:[%s2 + $0x18] sm:$0xff]
        %270 = vset.pattern.permute.xlu0 0
        %271 = vperm.xlu0 %270, %v265
        %v272 = vpop.permute.xlu0 %271
        %275 = vset.pattern.permute.xlu0 0
        %276 = vperm.xlu0 %275, %v266
        %v277 = vpop.permute.xlu0 %276
        %280 = vset.pattern.permute.xlu0 0
        %281 = vperm.xlu0 %280, %v267
        %v282 = vpop.permute.xlu0 %281
        %285 = vset.pattern.permute.xlu0 0
        %286 = vperm.xlu0 %285, %v268
        %v287 = vpop.permute.xlu0 %286
        %vm289 = vcmask 523264
        %v291 = vsel %vm289, %v245, 0
        %v294 = vsel %vm289, %v246, 0
        %v297 = vsel %vm289, %v247, 0
        %v300 = vsel %vm289, %v248, 0
        %v302 = vand.u32 %v250, 4294901760
        %303 = vmatprep.subr.mxu0 %v302
        %v304 = vand.u32 %v249, 4294901760
        %305 = vmatpush1.msra.mxu0 %v304
        %v306 = vand.u32 %v252, 4294901760
        %307 = vmatprep.subr.mxu0 %v306
        %v308 = vand.u32 %v251, 4294901760
        %309 = vmatpush1.msra.mxu0 %v308
        %v310 = vand.u32 %v254, 4294901760
        %311 = vmatprep.subr.mxu0 %v310
        %v312 = vand.u32 %v253, 4294901760
        %313 = vmatpush1.msra.mxu0 %v312
        %v314 = vand.u32 %v256, 4294901760
        %315 = vmatprep.subr.mxu0 %v314
        %v316 = vand.u32 %v255, 4294901760
        %317 = vmatpush1.msra.mxu0 %v316
        %v318 = vand.u32 %v258, 4294901760
        %319 = vmatprep.subr.mxu0 %v318
        %v320 = vand.u32 %v257, 4294901760
        %321 = vmatpush1.msra.mxu0 %v320
        %v322 = vand.u32 %v260, 4294901760
        %323 = vmatprep.subr.mxu0 %v322
        %v324 = vand.u32 %v259, 4294901760
        %325 = vmatpush1.msra.mxu0 %v324
        %v326 = vand.u32 %v262, 4294901760
        %327 = vmatprep.subr.mxu0 %v326
        %v328 = vand.u32 %v261, 4294901760
        %329 = vmatpush1.msra.mxu0 %v328
        %v330 = vand.u32 %v264, 4294901760
        %331 = vmatprep.subr.mxu0 %v330
        %v332 = vand.u32 %v263, 4294901760
        %333 = vmatpush1.msra.mxu0 %v332
        %334 = vmatprep.subr.mxu0 0.0
        %335 = vmatpush1.msra.mxu0 0.0
        %336 = vmatprep.subr.mxu0 0.0
        %337 = vmatpush1.msra.mxu0 0.0
        %338 = vmatprep.subr.mxu0 0.0
        %339 = vmatpush1.msra.mxu0 0.0
        %340 = vmatprep.subr.mxu0 0.0
        %341 = vmatpush1.msra.mxu0 0.0
        %342 = vmatprep.subr.mxu0 0.0
        %343 = vmatpush1.msra.mxu0 0.0
        %344 = vmatprep.subr.mxu0 0.0
        %345 = vmatpush1.msra.mxu0 0.0
        %346 = vmatprep.subr.mxu0 0.0
        %347 = vmatpush1.msra.mxu0 0.0
        %348 = vmatprep.subr.mxu0 0.0
        %349 = vmatpush1.msra.mxu0 0.0
        %350 = vmatprep.subr.mxu0 0.0
        %351 = vmatpush1.msra.mxu0 0.0
        %352 = vmatprep.subr.mxu0 0.0
        %353 = vmatpush1.msra.mxu0 0.0
        %354 = vmatprep.subr.mxu0 0.0
        %355 = vmatpush1.msra.mxu0 0.0
        %356 = vmatprep.subr.mxu0 0.0
        %357 = vmatpush1.msra.mxu0 0.0
        %358 = vmatprep.subr.mxu0 0.0
        %359 = vmatpush1.msra.mxu0 0.0
        %360 = vmatprep.subr.mxu0 0.0
        %361 = vmatpush1.msra.mxu0 0.0
        %362 = vmatprep.subr.mxu0 0.0
        %363 = vmatpush1.msra.mxu0 0.0
        %364 = vmatprep.subr.mxu0 0.0
        %365 = vmatpush1.msra.mxu0 0.0
        %366 = vmatprep.subr.mxu0 0.0
        %367 = vmatpush1.msra.mxu0 0.0
        %368 = vmatprep.subr.mxu0 0.0
        %369 = vmatpush1.msra.mxu0 0.0
        %370 = vmatprep.subr.mxu0 0.0
        %371 = vmatpush1.msra.mxu0 0.0
        %372 = vmatprep.subr.mxu0 0.0
        %373 = vmatpush1.msra.mxu0 0.0
        %374 = vmatprep.subr.mxu0 0.0
        %375 = vmatpush1.msra.mxu0 0.0
        %376 = vmatprep.subr.mxu0 0.0
        %377 = vmatpush1.msra.mxu0 0.0
        %378 = vmatprep.subr.mxu0 0.0
        %379 = vmatpush1.msra.mxu0 0.0
        %380 = vmatprep.subr.mxu0 0.0
        %381 = vmatpush1.msra.mxu0 0.0
        %382 = vmatprep.mubr.f32.mxu0 0.0
        %v383 = vand.u32 %v291, 4294901760
        %v384 = vsub.f32 %v291, %v383
        %v385 = vand.u32 %v384, 4294901760
        %v386 = vsub.f32 %v384, %v385
        %v387 = vand.u32 %v386, 4294901760
        %388 = vmatmul.mubr.f32.gmra.mrb[0].mxu0 %v387
        %v389 = vpop.f32.mrb[0].mxu0
        %v390 = vadd.f32 %v272, %v389
        %v391 = vpop.f32.mrb[0].mxu0
        %v392 = vadd.f32 %v272, %v391
        %393 = vmatprep.mubr.f32.mxu0 0.0
        %v394 = vand.u32 %v294, 4294901760
        %v395 = vsub.f32 %v294, %v394
        %v396 = vand.u32 %v395, 4294901760
        %v397 = vsub.f32 %v395, %v396
        %v398 = vand.u32 %v397, 4294901760
        %399 = vmatmul.mubr.f32.gmra.mrb[0].mxu0 %v398
        %v400 = vpop.f32.mrb[0].mxu0
        %v401 = vadd.f32 %v277, %v400
        %v402 = vpop.f32.mrb[0].mxu0
        %v403 = vadd.f32 %v277, %v402
        %404 = vmatprep.mubr.f32.mxu0 0.0
        %v405 = vand.u32 %v297, 4294901760
        %v406 = vsub.f32 %v297, %v405
        %v407 = vand.u32 %v406, 4294901760
        %v408 = vsub.f32 %v406, %v407
        %v409 = vand.u32 %v408, 4294901760
        %410 = vmatmul.mubr.f32.gmra.mrb[0].mxu0 %v409
        %v411 = vpop.f32.mrb[0].mxu0
        %v412 = vadd.f32 %v282, %v411
        %v413 = vpop.f32.mrb[0].mxu0
        %v414 = vadd.f32 %v282, %v413
        %415 = vmatprep.mubr.f32.mxu0 0.0
        %v416 = vand.u32 %v300, 4294901760
        %v417 = vsub.f32 %v300, %v416
        %v418 = vand.u32 %v417, 4294901760
        %v419 = vsub.f32 %v417, %v418
        %v420 = vand.u32 %v419, 4294901760
        %421 = vmatmul.mubr.f32.gmra.mrb[0].mxu0 %v420
        %v422 = vpop.f32.mrb[0].mxu0
        %v423 = vadd.f32 %v287, %v422
        %v424 = vpop.f32.mrb[0].mxu0
        %v425 = vadd.f32 %v287, %v424
        %426 = vdwg.mxu0
        %v427 = vand.u32 %v250, 4294901760
        %v428 = vsub.f32 %v250, %v427
        %v429 = vand.u32 %v428, 4294901760
        %v430 = vsub.f32 %v428, %v429
        %v431 = vand.u32 %v430, 4294901760
        %432 = vmatprep.subr.mxu0 %v431
        %v433 = vand.u32 %v249, 4294901760
        %v434 = vsub.f32 %v249, %v433
        %v435 = vand.u32 %v434, 4294901760
        %v436 = vsub.f32 %v434, %v435
        %v437 = vand.u32 %v436, 4294901760
        %438 = vmatpush1.msra.mxu0 %v437
        %v439 = vand.u32 %v252, 4294901760
        %v440 = vsub.f32 %v252, %v439
        %v441 = vand.u32 %v440, 4294901760
        %v442 = vsub.f32 %v440, %v441
        %v443 = vand.u32 %v442, 4294901760
        %444 = vmatprep.subr.mxu0 %v443
        %v445 = vand.u32 %v251, 4294901760
        %v446 = vsub.f32 %v251, %v445
        %v447 = vand.u32 %v446, 4294901760
        %v448 = vsub.f32 %v446, %v447
        %v449 = vand.u32 %v448, 4294901760
        %450 = vmatpush1.msra.mxu0 %v449
        %v451 = vand.u32 %v254, 4294901760
        %v452 = vsub.f32 %v254, %v451
        %v453 = vand.u32 %v452, 4294901760
        %v454 = vsub.f32 %v452, %v453
        %v455 = vand.u32 %v454, 4294901760
        %456 = vmatprep.subr.mxu0 %v455
        %v457 = vand.u32 %v253, 4294901760
        %v458 = vsub.f32 %v253, %v457
        %v459 = vand.u32 %v458, 4294901760
        %v460 = vsub.f32 %v458, %v459
        %v461 = vand.u32 %v460, 4294901760
        %462 = vmatpush1.msra.mxu0 %v461
        %v463 = vand.u32 %v256, 4294901760
        %v464 = vsub.f32 %v256, %v463
        %v465 = vand.u32 %v464, 4294901760
        %v466 = vsub.f32 %v464, %v465
        %v467 = vand.u32 %v466, 4294901760
        %468 = vmatprep.subr.mxu0 %v467
        %v469 = vand.u32 %v255, 4294901760
        %v470 = vsub.f32 %v255, %v469
        %v471 = vand.u32 %v470, 4294901760
        %v472 = vsub.f32 %v470, %v471
        %v473 = vand.u32 %v472, 4294901760
        %474 = vmatpush1.msra.mxu0 %v473
        %v475 = vand.u32 %v258, 4294901760
        %v476 = vsub.f32 %v258, %v475
        %v477 = vand.u32 %v476, 4294901760
        %v478 = vsub.f32 %v476, %v477
        %v479 = vand.u32 %v478, 4294901760
        %480 = vmatprep.subr.mxu0 %v479
        %v481 = vand.u32 %v257, 4294901760
        %v482 = vsub.f32 %v257, %v481
        %v483 = vand.u32 %v482, 4294901760
        %v484 = vsub.f32 %v482, %v483
        %v485 = vand.u32 %v484, 4294901760
        %486 = vmatpush1.msra.mxu0 %v485
        %v487 = vand.u32 %v260, 4294901760
        %v488 = vsub.f32 %v260, %v487
        %v489 = vand.u32 %v488, 4294901760
        %v490 = vsub.f32 %v488, %v489
        %v491 = vand.u32 %v490, 4294901760
        %492 = vmatprep.subr.mxu0 %v491
        %v493 = vand.u32 %v259, 4294901760
        %v494 = vsub.f32 %v259, %v493
        %v495 = vand.u32 %v494, 4294901760
        %v496 = vsub.f32 %v494, %v495
        %v497 = vand.u32 %v496, 4294901760
        %498 = vmatpush1.msra.mxu0 %v497
        %v499 = vand.u32 %v262, 4294901760
        %v500 = vsub.f32 %v262, %v499
        %v501 = vand.u32 %v500, 4294901760
        %v502 = vsub.f32 %v500, %v501
        %v503 = vand.u32 %v502, 4294901760
        %504 = vmatprep.subr.mxu0 %v503
        %v505 = vand.u32 %v261, 4294901760
        %v506 = vsub.f32 %v261, %v505
        %v507 = vand.u32 %v506, 4294901760
        %v508 = vsub.f32 %v506, %v507
        %v509 = vand.u32 %v508, 4294901760
        %510 = vmatpush1.msra.mxu0 %v509
        %v511 = vand.u32 %v264, 4294901760
        %v512 = vsub.f32 %v264, %v511
        %v513 = vand.u32 %v512, 4294901760
        %v514 = vsub.f32 %v512, %v513
        %v515 = vand.u32 %v514, 4294901760
        %516 = vmatprep.subr.mxu0 %v515
        %v517 = vand.u32 %v263, 4294901760
        %v518 = vsub.f32 %v263, %v517
        %v519 = vand.u32 %v518, 4294901760
        %v520 = vsub.f32 %v518, %v519
        %v521 = vand.u32 %v520, 4294901760
        %522 = vmatpush1.msra.mxu0 %v521
        %523 = vmatprep.subr.mxu0 0.0
        %524 = vmatpush1.msra.mxu0 0.0
        %525 = vmatprep.subr.mxu0 0.0
        %526 = vmatpush1.msra.mxu0 0.0
        %527 = vmatprep.subr.mxu0 0.0
        %528 = vmatpush1.msra.mxu0 0.0
        %529 = vmatprep.subr.mxu0 0.0
        %530 = vmatpush1.msra.mxu0 0.0
        %531 = vmatprep.subr.mxu0 0.0
        %532 = vmatpush1.msra.mxu0 0.0
        %533 = vmatprep.subr.mxu0 0.0
        %534 = vmatpush1.msra.mxu0 0.0
        %535 = vmatprep.subr.mxu0 0.0
        %536 = vmatpush1.msra.mxu0 0.0
        %537 = vmatprep.subr.mxu0 0.0
        %538 = vmatpush1.msra.mxu0 0.0
        %539 = vmatprep.subr.mxu0 0.0
        %540 = vmatpush1.msra.mxu0 0.0
        %541 = vmatprep.subr.mxu0 0.0
        %542 = vmatpush1.msra.mxu0 0.0
        %543 = vmatprep.subr.mxu0 0.0
        %544 = vmatpush1.msra.mxu0 0.0
        %545 = vmatprep.subr.mxu0 0.0
        %546 = vmatpush1.msra.mxu0 0.0
        %547 = vmatprep.subr.mxu0 0.0
        %548 = vmatpush1.msra.mxu0 0.0
        %549 = vmatprep.subr.mxu0 0.0
        %550 = vmatpush1.msra.mxu0 0.0
        %551 = vmatprep.subr.mxu0 0.0
        %552 = vmatpush1.msra.mxu0 0.0
        %553 = vmatprep.subr.mxu0 0.0
        %554 = vmatpush1.msra.mxu0 0.0
        %555 = vmatprep.subr.mxu0 0.0
        %556 = vmatpush1.msra.mxu0 0.0
        %557 = vmatprep.subr.mxu0 0.0
        %558 = vmatpush1.msra.mxu0 0.0
        %559 = vmatprep.subr.mxu0 0.0
        %560 = vmatpush1.msra.mxu0 0.0
        %561 = vmatprep.subr.mxu0 0.0
        %562 = vmatpush1.msra.mxu0 0.0
        %563 = vmatprep.subr.mxu0 0.0
        %564 = vmatpush1.msra.mxu0 0.0
        %565 = vmatprep.subr.mxu0 0.0
        %566 = vmatpush1.msra.mxu0 0.0
        %567 = vmatprep.subr.mxu0 0.0
        %568 = vmatpush1.msra.mxu0 0.0
        %569 = vmatprep.subr.mxu0 0.0
        %570 = vmatpush1.msra.mxu0 0.0
        %571 = vmatprep.mubr.f32.mxu0 0.0
        %v572 = vand.u32 %v291, 4294901760
        %573 = vmatmul.mubr.f32.gmra.mrb[0].mxu0 %v572
        %v574 = vpop.f32.mrb[0].mxu0
        %v575 = vadd.f32 %v390, %v574
        %v576 = vpop.f32.mrb[0].mxu0
        %v577 = vadd.f32 %v392, %v576
        %578 = vmatprep.mubr.f32.mxu0 0.0
        %v579 = vand.u32 %v294, 4294901760
        %580 = vmatmul.mubr.f32.gmra.mrb[0].mxu0 %v579
        %v581 = vpop.f32.mrb[0].mxu0
        %v582 = vadd.f32 %v401, %v581
        %v583 = vpop.f32.mrb[0].mxu0
        %v584 = vadd.f32 %v403, %v583
        %585 = vmatprep.mubr.f32.mxu0 0.0
        %v586 = vand.u32 %v297, 4294901760
        %587 = vmatmul.mubr.f32.gmra.mrb[0].mxu0 %v586
        %v588 = vpop.f32.mrb[0].mxu0
        %v589 = vadd.f32 %v412, %v588
        %v590 = vpop.f32.mrb[0].mxu0
        %v591 = vadd.f32 %v414, %v590
        %592 = vmatprep.mubr.f32.mxu0 0.0
        %v593 = vand.u32 %v300, 4294901760
        %594 = vmatmul.mubr.f32.gmra.mrb[0].mxu0 %v593
        %v595 = vpop.f32.mrb[0].mxu0
        %v596 = vadd.f32 %v423, %v595
        %v597 = vpop.f32.mrb[0].mxu0
        %v598 = vadd.f32 %v425, %v597
        %599 = vdwg.mxu0
        %v600 = vand.u32 %v250, 4294901760
        %v601 = vsub.f32 %v250, %v600
        %602 = vmatprep.subr.mxu0 %v601
        %v603 = vand.u32 %v249, 4294901760
        %v604 = vsub.f32 %v249, %v603
        %605 = vmatpush1.msra.mxu0 %v604
        %v606 = vand.u32 %v252, 4294901760
        %v607 = vsub.f32 %v252, %v606
        %608 = vmatprep.subr.mxu0 %v607
        %v609 = vand.u32 %v251, 4294901760
        %v610 = vsub.f32 %v251, %v609
        %611 = vmatpush1.msra.mxu0 %v610
        %v612 = vand.u32 %v254, 4294901760
        %v613 = vsub.f32 %v254, %v612
        %614 = vmatprep.subr.mxu0 %v613
        %v615 = vand.u32 %v253, 4294901760
        %v616 = vsub.f32 %v253, %v615
        %617 = vmatpush1.msra.mxu0 %v616
        %v618 = vand.u32 %v256, 4294901760
        %v619 = vsub.f32 %v256, %v618
        %620 = vmatprep.subr.mxu0 %v619
        %v621 = vand.u32 %v255, 4294901760
        %v622 = vsub.f32 %v255, %v621
        %623 = vmatpush1.msra.mxu0 %v622
        %v624 = vand.u32 %v258, 4294901760
        %v625 = vsub.f32 %v258, %v624
        %626 = vmatprep.subr.mxu0 %v625
        %v627 = vand.u32 %v257, 4294901760
        %v628 = vsub.f32 %v257, %v627
        %629 = vmatpush1.msra.mxu0 %v628
        %v630 = vand.u32 %v260, 4294901760
        %v631 = vsub.f32 %v260, %v630
        %632 = vmatprep.subr.mxu0 %v631
        %v633 = vand.u32 %v259, 4294901760
        %v634 = vsub.f32 %v259, %v633
        %635 = vmatpush1.msra.mxu0 %v634
        %v636 = vand.u32 %v262, 4294901760
        %v637 = vsub.f32 %v262, %v636
        %638 = vmatprep.subr.mxu0 %v637
        %v639 = vand.u32 %v261, 4294901760
        %v640 = vsub.f32 %v261, %v639
        %641 = vmatpush1.msra.mxu0 %v640
        %v642 = vand.u32 %v264, 4294901760
        %v643 = vsub.f32 %v264, %v642
        %644 = vmatprep.subr.mxu0 %v643
        %v645 = vand.u32 %v263, 4294901760
        %v646 = vsub.f32 %v263, %v645
        %647 = vmatpush1.msra.mxu0 %v646
        %648 = vmatprep.subr.mxu0 0.0
        %649 = vmatpush1.msra.mxu0 0.0
        %650 = vmatprep.subr.mxu0 0.0
        %651 = vmatpush1.msra.mxu0 0.0
        %652 = vmatprep.subr.mxu0 0.0
        %653 = vmatpush1.msra.mxu0 0.0
        %654 = vmatprep.subr.mxu0 0.0
        %655 = vmatpush1.msra.mxu0 0.0
        %656 = vmatprep.subr.mxu0 0.0
        %657 = vmatpush1.msra.mxu0 0.0
        %658 = vmatprep.subr.mxu0 0.0
        %659 = vmatpush1.msra.mxu0 0.0
        %660 = vmatprep.subr.mxu0 0.0
        %661 = vmatpush1.msra.mxu0 0.0
        %662 = vmatprep.subr.mxu0 0.0
        %663 = vmatpush1.msra.mxu0 0.0
        %664 = vmatprep.subr.mxu0 0.0
        %665 = vmatpush1.msra.mxu0 0.0
        %666 = vmatprep.subr.mxu0 0.0
        %667 = vmatpush1.msra.mxu0 0.0
        %668 = vmatprep.subr.mxu0 0.0
        %669 = vmatpush1.msra.mxu0 0.0
        %670 = vmatprep.subr.mxu0 0.0
        %671 = vmatpush1.msra.mxu0 0.0
        %672 = vmatprep.subr.mxu0 0.0
        %673 = vmatpush1.msra.mxu0 0.0
        %674 = vmatprep.subr.mxu0 0.0
        %675 = vmatpush1.msra.mxu0 0.0
        %676 = vmatprep.subr.mxu0 0.0
        %677 = vmatpush1.msra.mxu0 0.0
        %678 = vmatprep.subr.mxu0 0.0
        %679 = vmatpush1.msra.mxu0 0.0
        %680 = vmatprep.subr.mxu0 0.0
        %681 = vmatpush1.msra.mxu0 0.0
        %682 = vmatprep.subr.mxu0 0.0
        %683 = vmatpush1.msra.mxu0 0.0
        %684 = vmatprep.subr.mxu0 0.0
        %685 = vmatpush1.msra.mxu0 0.0
        %686 = vmatprep.subr.mxu0 0.0
        %687 = vmatpush1.msra.mxu0 0.0
        %688 = vmatprep.subr.mxu0 0.0
        %689 = vmatpush1.msra.mxu0 0.0
        %690 = vmatprep.subr.mxu0 0.0
        %691 = vmatpush1.msra.mxu0 0.0
        %692 = vmatprep.subr.mxu0 0.0
        %693 = vmatpush1.msra.mxu0 0.0
        %694 = vmatprep.subr.mxu0 0.0
        %695 = vmatpush1.msra.mxu0 0.0
        %696 = vmatprep.mubr.f32.mxu0 0.0
        %v697 = vand.u32 %v291, 4294901760
        %v698 = vsub.f32 %v291, %v697
        %699 = vmatmul.mubr.f32.gmra.mrb[0].mxu0 %v698
        %v700 = vpop.f32.mrb[0].mxu0
        %v701 = vadd.f32 %v575, %v700
        %v702 = vpop.f32.mrb[0].mxu0
        %v703 = vadd.f32 %v577, %v702
        %704 = vmatprep.mubr.f32.mxu0 0.0
        %v705 = vand.u32 %v294, 4294901760
        %v706 = vsub.f32 %v294, %v705
        %707 = vmatmul.mubr.f32.gmra.mrb[0].mxu0 %v706
        %v708 = vpop.f32.mrb[0].mxu0
        %v709 = vadd.f32 %v582, %v708
        %v710 = vpop.f32.mrb[0].mxu0
        %v711 = vadd.f32 %v584, %v710
        %712 = vmatprep.mubr.f32.mxu0 0.0
        %v713 = vand.u32 %v297, 4294901760
        %v714 = vsub.f32 %v297, %v713
        %715 = vmatmul.mubr.f32.gmra.mrb[0].mxu0 %v714
        %v716 = vpop.f32.mrb[0].mxu0
        %v717 = vadd.f32 %v589, %v716
        %v718 = vpop.f32.mrb[0].mxu0
        %v719 = vadd.f32 %v591, %v718
        %720 = vmatprep.mubr.f32.mxu0 0.0
        %v721 = vand.u32 %v300, 4294901760
        %v722 = vsub.f32 %v300, %v721
        %723 = vmatmul.mubr.f32.gmra.mrb[0].mxu0 %v722
        %v724 = vpop.f32.mrb[0].mxu0
        %v725 = vadd.f32 %v596, %v724
        %v726 = vpop.f32.mrb[0].mxu0
        %v727 = vadd.f32 %v598, %v726
        %728 = vdwg.mxu0
        %v729 = vand.u32 %v250, 4294901760
        %730 = vmatprep.subr.mxu0 %v729
        %v731 = vand.u32 %v249, 4294901760
        %732 = vmatpush1.msra.mxu0 %v731
        %v733 = vand.u32 %v252, 4294901760
        %734 = vmatprep.subr.mxu0 %v733
        %v735 = vand.u32 %v251, 4294901760
        %736 = vmatpush1.msra.mxu0 %v735
        %v737 = vand.u32 %v254, 4294901760
        %738 = vmatprep.subr.mxu0 %v737
        %v739 = vand.u32 %v253, 4294901760
        %740 = vmatpush1.msra.mxu0 %v739
        %v741 = vand.u32 %v256, 4294901760
        %742 = vmatprep.subr.mxu0 %v741
        %v743 = vand.u32 %v255, 4294901760
        %744 = vmatpush1.msra.mxu0 %v743
        %v745 = vand.u32 %v258, 4294901760
        %746 = vmatprep.subr.mxu0 %v745
        %v747 = vand.u32 %v257, 4294901760
        %748 = vmatpush1.msra.mxu0 %v747
        %v749 = vand.u32 %v260, 4294901760
        %750 = vmatprep.subr.mxu0 %v749
        %v751 = vand.u32 %v259, 4294901760
        %752 = vmatpush1.msra.mxu0 %v751
        %v753 = vand.u32 %v262, 4294901760
        %754 = vmatprep.subr.mxu0 %v753
        %v755 = vand.u32 %v261, 4294901760
        %756 = vmatpush1.msra.mxu0 %v755
        %v757 = vand.u32 %v264, 4294901760
        %758 = vmatprep.subr.mxu0 %v757
        %v759 = vand.u32 %v263, 4294901760
        %760 = vmatpush1.msra.mxu0 %v759
        %761 = vmatprep.subr.mxu0 0.0
        %762 = vmatpush1.msra.mxu0 0.0
        %763 = vmatprep.subr.mxu0 0.0
        %764 = vmatpush1.msra.mxu0 0.0
        %765 = vmatprep.subr.mxu0 0.0
        %766 = vmatpush1.msra.mxu0 0.0
        %767 = vmatprep.subr.mxu0 0.0
        %768 = vmatpush1.msra.mxu0 0.0
        %769 = vmatprep.subr.mxu0 0.0
        %770 = vmatpush1.msra.mxu0 0.0
        %771 = vmatprep.subr.mxu0 0.0
        %772 = vmatpush1.msra.mxu0 0.0
        %773 = vmatprep.subr.mxu0 0.0
        %774 = vmatpush1.msra.mxu0 0.0
        %775 = vmatprep.subr.mxu0 0.0
        %776 = vmatpush1.msra.mxu0 0.0
        %777 = vmatprep.subr.mxu0 0.0
        %778 = vmatpush1.msra.mxu0 0.0
        %779 = vmatprep.subr.mxu0 0.0
        %780 = vmatpush1.msra.mxu0 0.0
        %781 = vmatprep.subr.mxu0 0.0
        %782 = vmatpush1.msra.mxu0 0.0
        %783 = vmatprep.subr.mxu0 0.0
        %784 = vmatpush1.msra.mxu0 0.0
        %785 = vmatprep.subr.mxu0 0.0
        %786 = vmatpush1.msra.mxu0 0.0
        %787 = vmatprep.subr.mxu0 0.0
        %788 = vmatpush1.msra.mxu0 0.0
        %789 = vmatprep.subr.mxu0 0.0
        %790 = vmatpush1.msra.mxu0 0.0
        %791 = vmatprep.subr.mxu0 0.0
        %792 = vmatpush1.msra.mxu0 0.0
        %793 = vmatprep.subr.mxu0 0.0
        %794 = vmatpush1.msra.mxu0 0.0
        %795 = vmatprep.subr.mxu0 0.0
        %796 = vmatpush1.msra.mxu0 0.0
        %797 = vmatprep.subr.mxu0 0.0
        %798 = vmatpush1.msra.mxu0 0.0
        %799 = vmatprep.subr.mxu0 0.0
        %800 = vmatpush1.msra.mxu0 0.0
        %801 = vmatprep.subr.mxu0 0.0
        %802 = vmatpush1.msra.mxu0 0.0
        %803 = vmatprep.subr.mxu0 0.0
        %804 = vmatpush1.msra.mxu0 0.0
        %805 = vmatprep.subr.mxu0 0.0
        %806 = vmatpush1.msra.mxu0 0.0
        %807 = vmatprep.subr.mxu0 0.0
        %808 = vmatpush1.msra.mxu0 0.0
        %809 = vmatprep.mubr.f32.mxu0 0.0
        %v810 = vand.u32 %v291, 4294901760
        %v811 = vsub.f32 %v291, %v810
        %v812 = vand.u32 %v811, 4294901760
        %813 = vmatmul.mubr.f32.gmra.mrb[0].mxu0 %v812
        %v814 = vpop.f32.mrb[0].mxu0
        %v815 = vadd.f32 %v701, %v814
        %v816 = vpop.f32.mrb[0].mxu0
        %v817 = vadd.f32 %v703, %v816
        %818 = vmatprep.mubr.f32.mxu0 0.0
        %v819 = vand.u32 %v294, 4294901760
        %v820 = vsub.f32 %v294, %v819
        %v821 = vand.u32 %v820, 4294901760
        %822 = vmatmul.mubr.f32.gmra.mrb[0].mxu0 %v821
        %v823 = vpop.f32.mrb[0].mxu0
        %v824 = vadd.f32 %v709, %v823
        %v825 = vpop.f32.mrb[0].mxu0
        %v826 = vadd.f32 %v711, %v825
        %827 = vmatprep.mubr.f32.mxu0 0.0
        %v828 = vand.u32 %v297, 4294901760
        %v829 = vsub.f32 %v297, %v828
        %v830 = vand.u32 %v829, 4294901760
        %831 = vmatmul.mubr.f32.gmra.mrb[0].mxu0 %v830
        %v832 = vpop.f32.mrb[0].mxu0
        %v833 = vadd.f32 %v717, %v832
        %v834 = vpop.f32.mrb[0].mxu0
        %v835 = vadd.f32 %v719, %v834
        %836 = vmatprep.mubr.f32.mxu0 0.0
        %v837 = vand.u32 %v300, 4294901760
        %v838 = vsub.f32 %v300, %v837
        %v839 = vand.u32 %v838, 4294901760
        %840 = vmatmul.mubr.f32.gmra.mrb[0].mxu0 %v839
        %v841 = vpop.f32.mrb[0].mxu0
        %v842 = vadd.f32 %v725, %v841
        %v843 = vpop.f32.mrb[0].mxu0
        %v844 = vadd.f32 %v727, %v843
        %845 = vdwg.mxu0
        %v846 = vand.u32 %v250, 4294901760
        %v847 = vsub.f32 %v250, %v846
        %v848 = vand.u32 %v847, 4294901760
        %849 = vmatprep.subr.mxu0 %v848
        %v850 = vand.u32 %v249, 4294901760
        %v851 = vsub.f32 %v249, %v850
        %v852 = vand.u32 %v851, 4294901760
        %853 = vmatpush1.msra.mxu0 %v852
        %v854 = vand.u32 %v252, 4294901760
        %v855 = vsub.f32 %v252, %v854
        %v856 = vand.u32 %v855, 4294901760
        %857 = vmatprep.subr.mxu0 %v856
        %v858 = vand.u32 %v251, 4294901760
        %v859 = vsub.f32 %v251, %v858
        %v860 = vand.u32 %v859, 4294901760
        %861 = vmatpush1.msra.mxu0 %v860
        %v862 = vand.u32 %v254, 4294901760
        %v863 = vsub.f32 %v254, %v862
        %v864 = vand.u32 %v863, 4294901760
        %865 = vmatprep.subr.mxu0 %v864
        %v866 = vand.u32 %v253, 4294901760
        %v867 = vsub.f32 %v253, %v866
        %v868 = vand.u32 %v867, 4294901760
        %869 = vmatpush1.msra.mxu0 %v868
        %v870 = vand.u32 %v256, 4294901760
        %v871 = vsub.f32 %v256, %v870
        %v872 = vand.u32 %v871, 4294901760
        %873 = vmatprep.subr.mxu0 %v872
        %v874 = vand.u32 %v255, 4294901760
        %v875 = vsub.f32 %v255, %v874
        %v876 = vand.u32 %v875, 4294901760
        %877 = vmatpush1.msra.mxu0 %v876
        %v878 = vand.u32 %v258, 4294901760
        %v879 = vsub.f32 %v258, %v878
        %v880 = vand.u32 %v879, 4294901760
        %881 = vmatprep.subr.mxu0 %v880
        %v882 = vand.u32 %v257, 4294901760
        %v883 = vsub.f32 %v257, %v882
        %v884 = vand.u32 %v883, 4294901760
        %885 = vmatpush1.msra.mxu0 %v884
        %v886 = vand.u32 %v260, 4294901760
        %v887 = vsub.f32 %v260, %v886
        %v888 = vand.u32 %v887, 4294901760
        %889 = vmatprep.subr.mxu0 %v888
        %v890 = vand.u32 %v259, 4294901760
        %v891 = vsub.f32 %v259, %v890
        %v892 = vand.u32 %v891, 4294901760
        %893 = vmatpush1.msra.mxu0 %v892
        %v894 = vand.u32 %v262, 4294901760
        %v895 = vsub.f32 %v262, %v894
        %v896 = vand.u32 %v895, 4294901760
        %897 = vmatprep.subr.mxu0 %v896
        %v898 = vand.u32 %v261, 4294901760
        %v899 = vsub.f32 %v261, %v898
        %v900 = vand.u32 %v899, 4294901760
        %901 = vmatpush1.msra.mxu0 %v900
        %v902 = vand.u32 %v264, 4294901760
        %v903 = vsub.f32 %v264, %v902
        %v904 = vand.u32 %v903, 4294901760
        %905 = vmatprep.subr.mxu0 %v904
        %v906 = vand.u32 %v263, 4294901760
        %v907 = vsub.f32 %v263, %v906
        %v908 = vand.u32 %v907, 4294901760
        %909 = vmatpush1.msra.mxu0 %v908
        %910 = vmatprep.subr.mxu0 0.0
        %911 = vmatpush1.msra.mxu0 0.0
        %912 = vmatprep.subr.mxu0 0.0
        %913 = vmatpush1.msra.mxu0 0.0
        %914 = vmatprep.subr.mxu0 0.0
        %915 = vmatpush1.msra.mxu0 0.0
        %916 = vmatprep.subr.mxu0 0.0
        %917 = vmatpush1.msra.mxu0 0.0
        %918 = vmatprep.subr.mxu0 0.0
        %919 = vmatpush1.msra.mxu0 0.0
        %920 = vmatprep.subr.mxu0 0.0
        %921 = vmatpush1.msra.mxu0 0.0
        %922 = vmatprep.subr.mxu0 0.0
        %923 = vmatpush1.msra.mxu0 0.0
        %924 = vmatprep.subr.mxu0 0.0
        %925 = vmatpush1.msra.mxu0 0.0
        %926 = vmatprep.subr.mxu0 0.0
        %927 = vmatpush1.msra.mxu0 0.0
        %928 = vmatprep.subr.mxu0 0.0
        %929 = vmatpush1.msra.mxu0 0.0
        %930 = vmatprep.subr.mxu0 0.0
        %931 = vmatpush1.msra.mxu0 0.0
        %932 = vmatprep.subr.mxu0 0.0
        %933 = vmatpush1.msra.mxu0 0.0
        %934 = vmatprep.subr.mxu0 0.0
        %935 = vmatpush1.msra.mxu0 0.0
        %936 = vmatprep.subr.mxu0 0.0
        %937 = vmatpush1.msra.mxu0 0.0
        %938 = vmatprep.subr.mxu0 0.0
        %939 = vmatpush1.msra.mxu0 0.0
        %940 = vmatprep.subr.mxu0 0.0
        %941 = vmatpush1.msra.mxu0 0.0
        %942 = vmatprep.subr.mxu0 0.0
        %943 = vmatpush1.msra.mxu0 0.0
        %944 = vmatprep.subr.mxu0 0.0
        %945 = vmatpush1.msra.mxu0 0.0
        %946 = vmatprep.subr.mxu0 0.0
        %947 = vmatpush1.msra.mxu0 0.0
        %948 = vmatprep.subr.mxu0 0.0
        %949 = vmatpush1.msra.mxu0 0.0
        %950 = vmatprep.subr.mxu0 0.0
        %951 = vmatpush1.msra.mxu0 0.0
        %952 = vmatprep.subr.mxu0 0.0
        %953 = vmatpush1.msra.mxu0 0.0
        %954 = vmatprep.subr.mxu0 0.0
        %955 = vmatpush1.msra.mxu0 0.0
        %956 = vmatprep.subr.mxu0 0.0
        %957 = vmatpush1.msra.mxu0 0.0
        %958 = vmatprep.mubr.f32.mxu0 0.0
        %v959 = vand.u32 %v291, 4294901760
        %960 = vmatmul.mubr.f32.gmra.mrb[0].mxu0 %v959
        %v961 = vpop.f32.mrb[0].mxu0
        %v962 = vadd.f32 %v815, %v961
        %v963 = vpop.f32.mrb[0].mxu0
        %v964 = vadd.f32 %v817, %v963
        %965 = vmatprep.mubr.f32.mxu0 0.0
        %v966 = vand.u32 %v294, 4294901760
        %967 = vmatmul.mubr.f32.gmra.mrb[0].mxu0 %v966
        %v968 = vpop.f32.mrb[0].mxu0
        %v969 = vadd.f32 %v824, %v968
        %v970 = vpop.f32.mrb[0].mxu0
        %v971 = vadd.f32 %v826, %v970
        %972 = vmatprep.mubr.f32.mxu0 0.0
        %v973 = vand.u32 %v297, 4294901760
        %974 = vmatmul.mubr.f32.gmra.mrb[0].mxu0 %v973
        %v975 = vpop.f32.mrb[0].mxu0
        %v976 = vadd.f32 %v833, %v975
        %v977 = vpop.f32.mrb[0].mxu0
        %v978 = vadd.f32 %v835, %v977
        %979 = vmatprep.mubr.f32.mxu0 0.0
        %v980 = vand.u32 %v300, 4294901760
        %981 = vmatmul.mubr.f32.gmra.mrb[0].mxu0 %v980
        %v982 = vpop.f32.mrb[0].mxu0
        %v983 = vadd.f32 %v842, %v982
        %v984 = vpop.f32.mrb[0].mxu0
        %v985 = vadd.f32 %v844, %v984
        %986 = vdwg.mxu0
        %v987 = vand.u32 %v250, 4294901760
        %988 = vmatprep.subr.mxu0 %v987
        %v989 = vand.u32 %v249, 4294901760
        %990 = vmatpush1.msra.mxu0 %v989
        %v991 = vand.u32 %v252, 4294901760
        %992 = vmatprep.subr.mxu0 %v991
        %v993 = vand.u32 %v251, 4294901760
        %994 = vmatpush1.msra.mxu0 %v993
        %v995 = vand.u32 %v254, 4294901760
        %996 = vmatprep.subr.mxu0 %v995
        %v997 = vand.u32 %v253, 4294901760
        %998 = vmatpush1.msra.mxu0 %v997
        %v999 = vand.u32 %v256, 4294901760
        %1000 = vmatprep.subr.mxu0 %v999
        %v1001 = vand.u32 %v255, 4294901760
        %1002 = vmatpush1.msra.mxu0 %v1001
        %v1003 = vand.u32 %v258, 4294901760
        %1004 = vmatprep.subr.mxu0 %v1003
        %v1005 = vand.u32 %v257, 4294901760
        %1006 = vmatpush1.msra.mxu0 %v1005
        %v1007 = vand.u32 %v260, 4294901760
        %1008 = vmatprep.subr.mxu0 %v1007
        %v1009 = vand.u32 %v259, 4294901760
        %1010 = vmatpush1.msra.mxu0 %v1009
        %v1011 = vand.u32 %v262, 4294901760
        %1012 = vmatprep.subr.mxu0 %v1011
        %v1013 = vand.u32 %v261, 4294901760
        %1014 = vmatpush1.msra.mxu0 %v1013
        %v1015 = vand.u32 %v264, 4294901760
        %1016 = vmatprep.subr.mxu0 %v1015
        %v1017 = vand.u32 %v263, 4294901760
        %1018 = vmatpush1.msra.mxu0 %v1017
        %1019 = vmatprep.subr.mxu0 0.0
        %1020 = vmatpush1.msra.mxu0 0.0
        %1021 = vmatprep.subr.mxu0 0.0
        %1022 = vmatpush1.msra.mxu0 0.0
        %1023 = vmatprep.subr.mxu0 0.0
        %1024 = vmatpush1.msra.mxu0 0.0
        %1025 = vmatprep.subr.mxu0 0.0
        %1026 = vmatpush1.msra.mxu0 0.0
        %1027 = vmatprep.subr.mxu0 0.0
        %1028 = vmatpush1.msra.mxu0 0.0
        %1029 = vmatprep.subr.mxu0 0.0
        %1030 = vmatpush1.msra.mxu0 0.0
        %1031 = vmatprep.subr.mxu0 0.0
        %1032 = vmatpush1.msra.mxu0 0.0
        %1033 = vmatprep.subr.mxu0 0.0
        %1034 = vmatpush1.msra.mxu0 0.0
        %1035 = vmatprep.subr.mxu0 0.0
        %1036 = vmatpush1.msra.mxu0 0.0
        %1037 = vmatprep.subr.mxu0 0.0
        %1038 = vmatpush1.msra.mxu0 0.0
        %1039 = vmatprep.subr.mxu0 0.0
        %1040 = vmatpush1.msra.mxu0 0.0
        %1041 = vmatprep.subr.mxu0 0.0
        %1042 = vmatpush1.msra.mxu0 0.0
        %1043 = vmatprep.subr.mxu0 0.0
        %1044 = vmatpush1.msra.mxu0 0.0
        %1045 = vmatprep.subr.mxu0 0.0
        %1046 = vmatpush1.msra.mxu0 0.0
        %1047 = vmatprep.subr.mxu0 0.0
        %1048 = vmatpush1.msra.mxu0 0.0
        %1049 = vmatprep.subr.mxu0 0.0
        %1050 = vmatpush1.msra.mxu0 0.0
        %1051 = vmatprep.subr.mxu0 0.0
        %1052 = vmatpush1.msra.mxu0 0.0
        %1053 = vmatprep.subr.mxu0 0.0
        %1054 = vmatpush1.msra.mxu0 0.0
        %1055 = vmatprep.subr.mxu0 0.0
        %1056 = vmatpush1.msra.mxu0 0.0
        %1057 = vmatprep.subr.mxu0 0.0
        %1058 = vmatpush1.msra.mxu0 0.0
        %1059 = vmatprep.subr.mxu0 0.0
        %1060 = vmatpush1.msra.mxu0 0.0
        %1061 = vmatprep.subr.mxu0 0.0
        %1062 = vmatpush1.msra.mxu0 0.0
        %1063 = vmatprep.subr.mxu0 0.0
        %1064 = vmatpush1.msra.mxu0 0.0
        %1065 = vmatprep.subr.mxu0 0.0
        %1066 = vmatpush1.msra.mxu0 0.0
        %1067 = vmatprep.mubr.f32.mxu0 0.0
        %v1068 = vand.u32 %v291, 4294901760
        %1069 = vmatmul.mubr.f32.gmra.mrb[0].mxu0 %v1068
        %v1070 = vpop.f32.mrb[0].mxu0
        %v1071 = vadd.f32 %v962, %v1070
        %v1072 = vpop.f32.mrb[0].mxu0
        %v1073 = vadd.f32 %v964, %v1072
        %1074 = vmatprep.mubr.f32.mxu0 0.0
        %v1075 = vand.u32 %v294, 4294901760
        %1076 = vmatmul.mubr.f32.gmra.mrb[0].mxu0 %v1075
        %v1077 = vpop.f32.mrb[0].mxu0
        %v1078 = vadd.f32 %v969, %v1077
        %v1079 = vpop.f32.mrb[0].mxu0
        %v1080 = vadd.f32 %v971, %v1079
        %1081 = vmatprep.mubr.f32.mxu0 0.0
        %v1082 = vand.u32 %v297, 4294901760
        %1083 = vmatmul.mubr.f32.gmra.mrb[0].mxu0 %v1082
        %v1084 = vpop.f32.mrb[0].mxu0
        %v1085 = vadd.f32 %v976, %v1084
        %v1086 = vpop.f32.mrb[0].mxu0
        %v1087 = vadd.f32 %v978, %v1086
        %1088 = vmatprep.mubr.f32.mxu0 0.0
        %v1089 = vand.u32 %v300, 4294901760
        %1090 = vmatmul.mubr.f32.gmra.mrb[0].mxu0 %v1089
        %v1091 = vpop.f32.mrb[0].mxu0
        %v1092 = vadd.f32 %v983, %v1091
        %v1093 = vpop.f32.mrb[0].mxu0
        %v1094 = vadd.f32 %v985, %v1093
        %1095 = vdwg.mxu0
        %v1096 = vmul.f32 %v1071, %v1071
        %v1097 = vmul.f32 %v1073, %v1073
        %v1098 = vmul.f32 %v1078, %v1078
        %v1099 = vmul.f32 %v1080, %v1080
        %v1100 = vmul.f32 %v1085, %v1085
        %v1101 = vmul.f32 %v1087, %v1087
        %v1102 = vmul.f32 %v1092, %v1092
        %v1103 = vmul.f32 %v1094, %v1094
        %v1104 = vadd.f32 %v1096, %v1098
        %v1105 = vadd.f32 %v1104, %v1100
        %v1106 = vadd.f32 %v1105, %v1102
        %v1107 = vrot.slane %v1106, 4
        %v1108 = vadd.f32 %v1106, %v1107
        %v1109 = vrot.slane %v1108, 2
        %v1110 = vadd.f32 %v1108, %v1109
        %v1111 = vrot.slane %v1110, 1
        %v1112 = vadd.f32 %v1110, %v1111
        %v1113 = vadd.f32 %v1097, %v1099
        %v1114 = vadd.f32 %v1113, %v1101
        %v1115 = vadd.f32 %v1114, %v1103
        %v1116 = vrot.slane %v1115, 4
        %v1117 = vadd.f32 %v1115, %v1116
        %v1118 = vrot.slane %v1117, 2
        %v1119 = vadd.f32 %v1117, %v1118
        %v1120 = vrot.slane %v1119, 1
        %v1121 = vadd.f32 %v1119, %v1120
        %v1122 = vrsqrt.pop %v1112
        %v1123 = vmul.f32 %v1112, %v1122
        %vm1124 = vcmp.eq.f32.partialorder %v1112, inf
        %v1125 = vsel %vm1124, %v1112, %v1123
        %vm1126 = vcmp.eq.f32.partialorder %v1112, 0.0
        %v1127 = vand.u32 %v1112, 2147483648
        %v1128 = vsel %vm1126, %v1127, %v1125
        %v1129 = vrsqrt.pop %v1121
        %v1130 = vmul.f32 %v1121, %v1129
        %vm1131 = vcmp.eq.f32.partialorder %v1121, inf
        %v1132 = vsel %vm1131, %v1121, %v1130
        %vm1133 = vcmp.eq.f32.partialorder %v1121, 0.0
        %v1134 = vand.u32 %v1121, 2147483648
        %v1135 = vsel %vm1133, %v1134, %v1132
        %v1136 = vmax.f32 %v1128, 1e-12
        %v1137 = vmax.f32 %v1135, 1e-12
        %v1138 = vrcp.pop %v1136
        %v1139 = vmul.f32 1.0, %v1138
        %v1140 = vrcp.pop %v1137
        %v1141 = vmul.f32 1.0, %v1140
        %v1142 = vld [vmem:[%s3] sm:$0xf]
        %vm1143 = vcmask 261120
        %v1145 = vsel %vm1143, %v1142, 0
        %v1147 = vand.u32 %v1073, 4294901760
        %1148 = vmatprep.subr.mxu0 %v1147
        %v1149 = vand.u32 %v1071, 4294901760
        %1150 = vmatpush1.msra.mxu0 %v1149
        %v1151 = vand.u32 %v1080, 4294901760
        %1152 = vmatprep.subr.mxu0 %v1151
        %v1153 = vand.u32 %v1078, 4294901760
        %1154 = vmatpush1.msra.mxu0 %v1153
        %v1155 = vand.u32 %v1087, 4294901760
        %1156 = vmatprep.subr.mxu0 %v1155
        %v1157 = vand.u32 %v1085, 4294901760
        %1158 = vmatpush1.msra.mxu0 %v1157
        %v1159 = vand.u32 %v1094, 4294901760
        %1160 = vmatprep.subr.mxu0 %v1159
        %v1161 = vand.u32 %v1092, 4294901760
        %1162 = vmatpush1.msra.mxu0 %v1161
        %1163 = vmatprep.subr.mxu0 0.0
        %1164 = vmatpush1.msra.mxu0 0.0
        %1165 = vmatprep.subr.mxu0 0.0
        %1166 = vmatpush1.msra.mxu0 0.0
        %1167 = vmatprep.subr.mxu0 0.0
        %1168 = vmatpush1.msra.mxu0 0.0
        %1169 = vmatprep.subr.mxu0 0.0
        %1170 = vmatpush1.msra.mxu0 0.0
        %1171 = vmatprep.subr.mxu0 0.0
        %1172 = vmatpush1.msra.mxu0 0.0
        %1173 = vmatprep.subr.mxu0 0.0
        %1174 = vmatpush1.msra.mxu0 0.0
        %1175 = vmatprep.subr.mxu0 0.0
        %1176 = vmatpush1.msra.mxu0 0.0
        %1177 = vmatprep.subr.mxu0 0.0
        %1178 = vmatpush1.msra.mxu0 0.0
        %1179 = vmatprep.subr.mxu0 0.0
        %1180 = vmatpush1.msra.mxu0 0.0
        %1181 = vmatprep.subr.mxu0 0.0
        %1182 = vmatpush1.msra.mxu0 0.0
        %1183 = vmatprep.subr.mxu0 0.0
        %1184 = vmatpush1.msra.mxu0 0.0
        %1185 = vmatprep.subr.mxu0 0.0
        %1186 = vmatpush1.msra.mxu0 0.0
        %1187 = vmatprep.subr.mxu0 0.0
        %1188 = vmatpush1.msra.mxu0 0.0
        %1189 = vmatprep.subr.mxu0 0.0
        %1190 = vmatpush1.msra.mxu0 0.0
        %1191 = vmatprep.subr.mxu0 0.0
        %1192 = vmatpush1.msra.mxu0 0.0
        %1193 = vmatprep.subr.mxu0 0.0
        %1194 = vmatpush1.msra.mxu0 0.0
        %1195 = vmatprep.subr.mxu0 0.0
        %1196 = vmatpush1.msra.mxu0 0.0
        %1197 = vmatprep.subr.mxu0 0.0
        %1198 = vmatpush1.msra.mxu0 0.0
        %1199 = vmatprep.subr.mxu0 0.0
        %1200 = vmatpush1.msra.mxu0 0.0
        %1201 = vmatprep.subr.mxu0 0.0
        %1202 = vmatpush1.msra.mxu0 0.0
        %1203 = vmatprep.subr.mxu0 0.0
        %1204 = vmatpush1.msra.mxu0 0.0
        %1205 = vmatprep.subr.mxu0 0.0
        %1206 = vmatpush1.msra.mxu0 0.0
        %1207 = vmatprep.subr.mxu0 0.0
        %1208 = vmatpush1.msra.mxu0 0.0
        %1209 = vmatprep.subr.mxu0 0.0
        %1210 = vmatpush1.msra.mxu0 0.0
        %1211 = vmatprep.subr.mxu0 0.0
        %1212 = vmatpush1.msra.mxu0 0.0
        %1213 = vmatprep.subr.mxu0 0.0
        %1214 = vmatpush1.msra.mxu0 0.0
        %1215 = vmatprep.subr.mxu0 0.0
        %1216 = vmatpush1.msra.mxu0 0.0
        %1217 = vmatprep.subr.mxu0 0.0
        %1218 = vmatpush1.msra.mxu0 0.0
        %1219 = vmatprep.mubr.f32.mxu0 0.0
        %v1220 = vand.u32 %v1145, 4294901760
        %v1221 = vsub.f32 %v1145, %v1220
        %v1222 = vand.u32 %v1221, 4294901760
        %v1223 = vsub.f32 %v1221, %v1222
        %v1224 = vand.u32 %v1223, 4294901760
        %1225 = vmatmul.mubr.f32.gmra.mrb[0].mxu0 %v1224
        %v1226 = vpop.f32.mrb[0].mxu0
        %v1227 = vadd.f32 0.0, %v1226
        %v1228 = vpop.f32.mrb[0].mxu0
        %v1229 = vadd.f32 0.0, %v1228
        %1230 = vdwg.mxu0
        %v1231 = vand.u32 %v1073, 4294901760
        %v1232 = vsub.f32 %v1073, %v1231
        %v1233 = vand.u32 %v1232, 4294901760
        %v1234 = vsub.f32 %v1232, %v1233
        %v1235 = vand.u32 %v1234, 4294901760
        %1236 = vmatprep.subr.mxu0 %v1235
        %v1237 = vand.u32 %v1071, 4294901760
        %v1238 = vsub.f32 %v1071, %v1237
        %v1239 = vand.u32 %v1238, 4294901760
        %v1240 = vsub.f32 %v1238, %v1239
        %v1241 = vand.u32 %v1240, 4294901760
        %1242 = vmatpush1.msra.mxu0 %v1241
        %v1243 = vand.u32 %v1080, 4294901760
        %v1244 = vsub.f32 %v1080, %v1243
        %v1245 = vand.u32 %v1244, 4294901760
        %v1246 = vsub.f32 %v1244, %v1245
        %v1247 = vand.u32 %v1246, 4294901760
        %1248 = vmatprep.subr.mxu0 %v1247
        %v1249 = vand.u32 %v1078, 4294901760
        %v1250 = vsub.f32 %v1078, %v1249
        %v1251 = vand.u32 %v1250, 4294901760
        %v1252 = vsub.f32 %v1250, %v1251
        %v1253 = vand.u32 %v1252, 4294901760
        %1254 = vmatpush1.msra.mxu0 %v1253
        %v1255 = vand.u32 %v1087, 4294901760
        %v1256 = vsub.f32 %v1087, %v1255
        %v1257 = vand.u32 %v1256, 4294901760
        %v1258 = vsub.f32 %v1256, %v1257
        %v1259 = vand.u32 %v1258, 4294901760
        %1260 = vmatprep.subr.mxu0 %v1259
        %v1261 = vand.u32 %v1085, 4294901760
        %v1262 = vsub.f32 %v1085, %v1261
        %v1263 = vand.u32 %v1262, 4294901760
        %v1264 = vsub.f32 %v1262, %v1263
        %v1265 = vand.u32 %v1264, 4294901760
        %1266 = vmatpush1.msra.mxu0 %v1265
        %v1267 = vand.u32 %v1094, 4294901760
        %v1268 = vsub.f32 %v1094, %v1267
        %v1269 = vand.u32 %v1268, 4294901760
        %v1270 = vsub.f32 %v1268, %v1269
        %v1271 = vand.u32 %v1270, 4294901760
        %1272 = vmatprep.subr.mxu0 %v1271
        %v1273 = vand.u32 %v1092, 4294901760
        %v1274 = vsub.f32 %v1092, %v1273
        %v1275 = vand.u32 %v1274, 4294901760
        %v1276 = vsub.f32 %v1274, %v1275
        %v1277 = vand.u32 %v1276, 4294901760
        %1278 = vmatpush1.msra.mxu0 %v1277
        %1279 = vmatprep.subr.mxu0 0.0
        %1280 = vmatpush1.msra.mxu0 0.0
        %1281 = vmatprep.subr.mxu0 0.0
        %1282 = vmatpush1.msra.mxu0 0.0
        %1283 = vmatprep.subr.mxu0 0.0
        %1284 = vmatpush1.msra.mxu0 0.0
        %1285 = vmatprep.subr.mxu0 0.0
        %1286 = vmatpush1.msra.mxu0 0.0
        %1287 = vmatprep.subr.mxu0 0.0
        %1288 = vmatpush1.msra.mxu0 0.0
        %1289 = vmatprep.subr.mxu0 0.0
        %1290 = vmatpush1.msra.mxu0 0.0
        %1291 = vmatprep.subr.mxu0 0.0
        %1292 = vmatpush1.msra.mxu0 0.0
        %1293 = vmatprep.subr.mxu0 0.0
        %1294 = vmatpush1.msra.mxu0 0.0
        %1295 = vmatprep.subr.mxu0 0.0
        %1296 = vmatpush1.msra.mxu0 0.0
        %1297 = vmatprep.subr.mxu0 0.0
        %1298 = vmatpush1.msra.mxu0 0.0
        %1299 = vmatprep.subr.mxu0 0.0
        %1300 = vmatpush1.msra.mxu0 0.0
        %1301 = vmatprep.subr.mxu0 0.0
        %1302 = vmatpush1.msra.mxu0 0.0
        %1303 = vmatprep.subr.mxu0 0.0
        %1304 = vmatpush1.msra.mxu0 0.0
        %1305 = vmatprep.subr.mxu0 0.0
        %1306 = vmatpush1.msra.mxu0 0.0
        %1307 = vmatprep.subr.mxu0 0.0
        %1308 = vmatpush1.msra.mxu0 0.0
        %1309 = vmatprep.subr.mxu0 0.0
        %1310 = vmatpush1.msra.mxu0 0.0
        %1311 = vmatprep.subr.mxu0 0.0
        %1312 = vmatpush1.msra.mxu0 0.0
        %1313 = vmatprep.subr.mxu0 0.0
        %1314 = vmatpush1.msra.mxu0 0.0
        %1315 = vmatprep.subr.mxu0 0.0
        %1316 = vmatpush1.msra.mxu0 0.0
        %1317 = vmatprep.subr.mxu0 0.0
        %1318 = vmatpush1.msra.mxu0 0.0
        %1319 = vmatprep.subr.mxu0 0.0
        %1320 = vmatpush1.msra.mxu0 0.0
        %1321 = vmatprep.subr.mxu0 0.0
        %1322 = vmatpush1.msra.mxu0 0.0
        %1323 = vmatprep.subr.mxu0 0.0
        %1324 = vmatpush1.msra.mxu0 0.0
        %1325 = vmatprep.subr.mxu0 0.0
        %1326 = vmatpush1.msra.mxu0 0.0
        %1327 = vmatprep.subr.mxu0 0.0
        %1328 = vmatpush1.msra.mxu0 0.0
        %1329 = vmatprep.subr.mxu0 0.0
        %1330 = vmatpush1.msra.mxu0 0.0
        %1331 = vmatprep.subr.mxu0 0.0
        %1332 = vmatpush1.msra.mxu0 0.0
        %1333 = vmatprep.subr.mxu0 0.0
        %1334 = vmatpush1.msra.mxu0 0.0
        %1335 = vmatprep.mubr.f32.mxu0 0.0
        %v1336 = vand.u32 %v1145, 4294901760
        %1337 = vmatmul.mubr.f32.gmra.mrb[0].mxu0 %v1336
        %v1338 = vpop.f32.mrb[0].mxu0
        %v1339 = vadd.f32 %v1227, %v1338
        %v1340 = vpop.f32.mrb[0].mxu0
        %v1341 = vadd.f32 %v1229, %v1340
        %1342 = vdwg.mxu0
        %v1343 = vand.u32 %v1073, 4294901760
        %v1344 = vsub.f32 %v1073, %v1343
        %1345 = vmatprep.subr.mxu0 %v1344
        %v1346 = vand.u32 %v1071, 4294901760
        %v1347 = vsub.f32 %v1071, %v1346
        %1348 = vmatpush1.msra.mxu0 %v1347
        %v1349 = vand.u32 %v1080, 4294901760
        %v1350 = vsub.f32 %v1080, %v1349
        %1351 = vmatprep.subr.mxu0 %v1350
        %v1352 = vand.u32 %v1078, 4294901760
        %v1353 = vsub.f32 %v1078, %v1352
        %1354 = vmatpush1.msra.mxu0 %v1353
        %v1355 = vand.u32 %v1087, 4294901760
        %v1356 = vsub.f32 %v1087, %v1355
        %1357 = vmatprep.subr.mxu0 %v1356
        %v1358 = vand.u32 %v1085, 4294901760
        %v1359 = vsub.f32 %v1085, %v1358
        %1360 = vmatpush1.msra.mxu0 %v1359
        %v1361 = vand.u32 %v1094, 4294901760
        %v1362 = vsub.f32 %v1094, %v1361
        %1363 = vmatprep.subr.mxu0 %v1362
        %v1364 = vand.u32 %v1092, 4294901760
        %v1365 = vsub.f32 %v1092, %v1364
        %1366 = vmatpush1.msra.mxu0 %v1365
        %1367 = vmatprep.subr.mxu0 0.0
        %1368 = vmatpush1.msra.mxu0 0.0
        %1369 = vmatprep.subr.mxu0 0.0
        %1370 = vmatpush1.msra.mxu0 0.0
        %1371 = vmatprep.subr.mxu0 0.0
        %1372 = vmatpush1.msra.mxu0 0.0
        %1373 = vmatprep.subr.mxu0 0.0
        %1374 = vmatpush1.msra.mxu0 0.0
        %1375 = vmatprep.subr.mxu0 0.0
        %1376 = vmatpush1.msra.mxu0 0.0
        %1377 = vmatprep.subr.mxu0 0.0
        %1378 = vmatpush1.msra.mxu0 0.0
        %1379 = vmatprep.subr.mxu0 0.0
        %1380 = vmatpush1.msra.mxu0 0.0
        %1381 = vmatprep.subr.mxu0 0.0
        %1382 = vmatpush1.msra.mxu0 0.0
        %1383 = vmatprep.subr.mxu0 0.0
        %1384 = vmatpush1.msra.mxu0 0.0
        %1385 = vmatprep.subr.mxu0 0.0
        %1386 = vmatpush1.msra.mxu0 0.0
        %1387 = vmatprep.subr.mxu0 0.0
        %1388 = vmatpush1.msra.mxu0 0.0
        %1389 = vmatprep.subr.mxu0 0.0
        %1390 = vmatpush1.msra.mxu0 0.0
        %1391 = vmatprep.subr.mxu0 0.0
        %1392 = vmatpush1.msra.mxu0 0.0
        %1393 = vmatprep.subr.mxu0 0.0
        %1394 = vmatpush1.msra.mxu0 0.0
        %1395 = vmatprep.subr.mxu0 0.0
        %1396 = vmatpush1.msra.mxu0 0.0
        %1397 = vmatprep.subr.mxu0 0.0
        %1398 = vmatpush1.msra.mxu0 0.0
        %1399 = vmatprep.subr.mxu0 0.0
        %1400 = vmatpush1.msra.mxu0 0.0
        %1401 = vmatprep.subr.mxu0 0.0
        %1402 = vmatpush1.msra.mxu0 0.0
        %1403 = vmatprep.subr.mxu0 0.0
        %1404 = vmatpush1.msra.mxu0 0.0
        %1405 = vmatprep.subr.mxu0 0.0
        %1406 = vmatpush1.msra.mxu0 0.0
        %1407 = vmatprep.subr.mxu0 0.0
        %1408 = vmatpush1.msra.mxu0 0.0
        %1409 = vmatprep.subr.mxu0 0.0
        %1410 = vmatpush1.msra.mxu0 0.0
        %1411 = vmatprep.subr.mxu0 0.0
        %1412 = vmatpush1.msra.mxu0 0.0
        %1413 = vmatprep.subr.mxu0 0.0
        %1414 = vmatpush1.msra.mxu0 0.0
        %1415 = vmatprep.subr.mxu0 0.0
        %1416 = vmatpush1.msra.mxu0 0.0
        %1417 = vmatprep.subr.mxu0 0.0
        %1418 = vmatpush1.msra.mxu0 0.0
        %1419 = vmatprep.subr.mxu0 0.0
        %1420 = vmatpush1.msra.mxu0 0.0
        %1421 = vmatprep.subr.mxu0 0.0
        %1422 = vmatpush1.msra.mxu0 0.0
        %1423 = vmatprep.mubr.f32.mxu0 0.0
        %v1424 = vand.u32 %v1145, 4294901760
        %v1425 = vsub.f32 %v1145, %v1424
        %1426 = vmatmul.mubr.f32.gmra.mrb[0].mxu0 %v1425
        %v1427 = vpop.f32.mrb[0].mxu0
        %v1428 = vadd.f32 %v1339, %v1427
        %v1429 = vpop.f32.mrb[0].mxu0
        %v1430 = vadd.f32 %v1341, %v1429
        %1431 = vdwg.mxu0
        %v1432 = vand.u32 %v1073, 4294901760
        %1433 = vmatprep.subr.mxu0 %v1432
        %v1434 = vand.u32 %v1071, 4294901760
        %1435 = vmatpush1.msra.mxu0 %v1434
        %v1436 = vand.u32 %v1080, 4294901760
        %1437 = vmatprep.subr.mxu0 %v1436
        %v1438 = vand.u32 %v1078, 4294901760
        %1439 = vmatpush1.msra.mxu0 %v1438
        %v1440 = vand.u32 %v1087, 4294901760
        %1441 = vmatprep.subr.mxu0 %v1440
        %v1442 = vand.u32 %v1085, 4294901760
        %1443 = vmatpush1.msra.mxu0 %v1442
        %v1444 = vand.u32 %v1094, 4294901760
        %1445 = vmatprep.subr.mxu0 %v1444
        %v1446 = vand.u32 %v1092, 4294901760
        %1447 = vmatpush1.msra.mxu0 %v1446
        %1448 = vmatprep.subr.mxu0 0.0
        %1449 = vmatpush1.msra.mxu0 0.0
        %1450 = vmatprep.subr.mxu0 0.0
        %1451 = vmatpush1.msra.mxu0 0.0
        %1452 = vmatprep.subr.mxu0 0.0
        %1453 = vmatpush1.msra.mxu0 0.0
        %1454 = vmatprep.subr.mxu0 0.0
        %1455 = vmatpush1.msra.mxu0 0.0
        %1456 = vmatprep.subr.mxu0 0.0
        %1457 = vmatpush1.msra.mxu0 0.0
        %1458 = vmatprep.subr.mxu0 0.0
        %1459 = vmatpush1.msra.mxu0 0.0
        %1460 = vmatprep.subr.mxu0 0.0
        %1461 = vmatpush1.msra.mxu0 0.0
        %1462 = vmatprep.subr.mxu0 0.0
        %1463 = vmatpush1.msra.mxu0 0.0
        %1464 = vmatprep.subr.mxu0 0.0
        %1465 = vmatpush1.msra.mxu0 0.0
        %1466 = vmatprep.subr.mxu0 0.0
        %1467 = vmatpush1.msra.mxu0 0.0
        %1468 = vmatprep.subr.mxu0 0.0
        %1469 = vmatpush1.msra.mxu0 0.0
        %1470 = vmatprep.subr.mxu0 0.0
        %1471 = vmatpush1.msra.mxu0 0.0
        %1472 = vmatprep.subr.mxu0 0.0
        %1473 = vmatpush1.msra.mxu0 0.0
        %1474 = vmatprep.subr.mxu0 0.0
        %1475 = vmatpush1.msra.mxu0 0.0
        %1476 = vmatprep.subr.mxu0 0.0
        %1477 = vmatpush1.msra.mxu0 0.0
        %1478 = vmatprep.subr.mxu0 0.0
        %1479 = vmatpush1.msra.mxu0 0.0
        %1480 = vmatprep.subr.mxu0 0.0
        %1481 = vmatpush1.msra.mxu0 0.0
        %1482 = vmatprep.subr.mxu0 0.0
        %1483 = vmatpush1.msra.mxu0 0.0
        %1484 = vmatprep.subr.mxu0 0.0
        %1485 = vmatpush1.msra.mxu0 0.0
        %1486 = vmatprep.subr.mxu0 0.0
        %1487 = vmatpush1.msra.mxu0 0.0
        %1488 = vmatprep.subr.mxu0 0.0
        %1489 = vmatpush1.msra.mxu0 0.0
        %1490 = vmatprep.subr.mxu0 0.0
        %1491 = vmatpush1.msra.mxu0 0.0
        %1492 = vmatprep.subr.mxu0 0.0
        %1493 = vmatpush1.msra.mxu0 0.0
        %1494 = vmatprep.subr.mxu0 0.0
        %1495 = vmatpush1.msra.mxu0 0.0
        %1496 = vmatprep.subr.mxu0 0.0
        %1497 = vmatpush1.msra.mxu0 0.0
        %1498 = vmatprep.subr.mxu0 0.0
        %1499 = vmatpush1.msra.mxu0 0.0
        %1500 = vmatprep.subr.mxu0 0.0
        %1501 = vmatpush1.msra.mxu0 0.0
        %1502 = vmatprep.subr.mxu0 0.0
        %1503 = vmatpush1.msra.mxu0 0.0
        %1504 = vmatprep.mubr.f32.mxu0 0.0
        %v1505 = vand.u32 %v1145, 4294901760
        %v1506 = vsub.f32 %v1145, %v1505
        %v1507 = vand.u32 %v1506, 4294901760
        %1508 = vmatmul.mubr.f32.gmra.mrb[0].mxu0 %v1507
        %v1509 = vpop.f32.mrb[0].mxu0
        %v1510 = vadd.f32 %v1428, %v1509
        %v1511 = vpop.f32.mrb[0].mxu0
        %v1512 = vadd.f32 %v1430, %v1511
        %1513 = vdwg.mxu0
        %v1514 = vand.u32 %v1073, 4294901760
        %v1515 = vsub.f32 %v1073, %v1514
        %v1516 = vand.u32 %v1515, 4294901760
        %1517 = vmatprep.subr.mxu0 %v1516
        %v1518 = vand.u32 %v1071, 4294901760
        %v1519 = vsub.f32 %v1071, %v1518
        %v1520 = vand.u32 %v1519, 4294901760
        %1521 = vmatpush1.msra.mxu0 %v1520
        %v1522 = vand.u32 %v1080, 4294901760
        %v1523 = vsub.f32 %v1080, %v1522
        %v1524 = vand.u32 %v1523, 4294901760
        %1525 = vmatprep.subr.mxu0 %v1524
        %v1526 = vand.u32 %v1078, 4294901760
        %v1527 = vsub.f32 %v1078, %v1526
        %v1528 = vand.u32 %v1527, 4294901760
        %1529 = vmatpush1.msra.mxu0 %v1528
        %v1530 = vand.u32 %v1087, 4294901760
        %v1531 = vsub.f32 %v1087, %v1530
        %v1532 = vand.u32 %v1531, 4294901760
        %1533 = vmatprep.subr.mxu0 %v1532
        %v1534 = vand.u32 %v1085, 4294901760
        %v1535 = vsub.f32 %v1085, %v1534
        %v1536 = vand.u32 %v1535, 4294901760
        %1537 = vmatpush1.msra.mxu0 %v1536
        %v1538 = vand.u32 %v1094, 4294901760
        %v1539 = vsub.f32 %v1094, %v1538
        %v1540 = vand.u32 %v1539, 4294901760
        %1541 = vmatprep.subr.mxu0 %v1540
        %v1542 = vand.u32 %v1092, 4294901760
        %v1543 = vsub.f32 %v1092, %v1542
        %v1544 = vand.u32 %v1543, 4294901760
        %1545 = vmatpush1.msra.mxu0 %v1544
        %1546 = vmatprep.subr.mxu0 0.0
        %1547 = vmatpush1.msra.mxu0 0.0
        %1548 = vmatprep.subr.mxu0 0.0
        %1549 = vmatpush1.msra.mxu0 0.0
        %1550 = vmatprep.subr.mxu0 0.0
        %1551 = vmatpush1.msra.mxu0 0.0
        %1552 = vmatprep.subr.mxu0 0.0
        %1553 = vmatpush1.msra.mxu0 0.0
        %1554 = vmatprep.subr.mxu0 0.0
        %1555 = vmatpush1.msra.mxu0 0.0
        %1556 = vmatprep.subr.mxu0 0.0
        %1557 = vmatpush1.msra.mxu0 0.0
        %1558 = vmatprep.subr.mxu0 0.0
        %1559 = vmatpush1.msra.mxu0 0.0
        %1560 = vmatprep.subr.mxu0 0.0
        %1561 = vmatpush1.msra.mxu0 0.0
        %1562 = vmatprep.subr.mxu0 0.0
        %1563 = vmatpush1.msra.mxu0 0.0
        %1564 = vmatprep.subr.mxu0 0.0
        %1565 = vmatpush1.msra.mxu0 0.0
        %1566 = vmatprep.subr.mxu0 0.0
        %1567 = vmatpush1.msra.mxu0 0.0
        %1568 = vmatprep.subr.mxu0 0.0
        %1569 = vmatpush1.msra.mxu0 0.0
        %1570 = vmatprep.subr.mxu0 0.0
        %1571 = vmatpush1.msra.mxu0 0.0
        %1572 = vmatprep.subr.mxu0 0.0
        %1573 = vmatpush1.msra.mxu0 0.0
        %1574 = vmatprep.subr.mxu0 0.0
        %1575 = vmatpush1.msra.mxu0 0.0
        %1576 = vmatprep.subr.mxu0 0.0
        %1577 = vmatpush1.msra.mxu0 0.0
        %1578 = vmatprep.subr.mxu0 0.0
        %1579 = vmatpush1.msra.mxu0 0.0
        %1580 = vmatprep.subr.mxu0 0.0
        %1581 = vmatpush1.msra.mxu0 0.0
        %1582 = vmatprep.subr.mxu0 0.0
        %1583 = vmatpush1.msra.mxu0 0.0
        %1584 = vmatprep.subr.mxu0 0.0
        %1585 = vmatpush1.msra.mxu0 0.0
        %1586 = vmatprep.subr.mxu0 0.0
        %1587 = vmatpush1.msra.mxu0 0.0
        %1588 = vmatprep.subr.mxu0 0.0
        %1589 = vmatpush1.msra.mxu0 0.0
        %1590 = vmatprep.subr.mxu0 0.0
        %1591 = vmatpush1.msra.mxu0 0.0
        %1592 = vmatprep.subr.mxu0 0.0
        %1593 = vmatpush1.msra.mxu0 0.0
        %1594 = vmatprep.subr.mxu0 0.0
        %1595 = vmatpush1.msra.mxu0 0.0
        %1596 = vmatprep.subr.mxu0 0.0
        %1597 = vmatpush1.msra.mxu0 0.0
        %1598 = vmatprep.subr.mxu0 0.0
        %1599 = vmatpush1.msra.mxu0 0.0
        %1600 = vmatprep.subr.mxu0 0.0
        %1601 = vmatpush1.msra.mxu0 0.0
        %1602 = vmatprep.mubr.f32.mxu0 0.0
        %v1603 = vand.u32 %v1145, 4294901760
        %1604 = vmatmul.mubr.f32.gmra.mrb[0].mxu0 %v1603
        %v1605 = vpop.f32.mrb[0].mxu0
        %v1606 = vadd.f32 %v1510, %v1605
        %v1607 = vpop.f32.mrb[0].mxu0
        %v1608 = vadd.f32 %v1512, %v1607
        %1609 = vdwg.mxu0
        %v1610 = vand.u32 %v1073, 4294901760
        %1611 = vmatprep.subr.mxu0 %v1610
        %v1612 = vand.u32 %v1071, 4294901760
        %1613 = vmatpush1.msra.mxu0 %v1612
        %v1614 = vand.u32 %v1080, 4294901760
        %1615 = vmatprep.subr.mxu0 %v1614
        %v1616 = vand.u32 %v1078, 4294901760
        %1617 = vmatpush1.msra.mxu0 %v1616
        %v1618 = vand.u32 %v1087, 4294901760
        %1619 = vmatprep.subr.mxu0 %v1618
        %v1620 = vand.u32 %v1085, 4294901760
        %1621 = vmatpush1.msra.mxu0 %v1620
        %v1622 = vand.u32 %v1094, 4294901760
        %1623 = vmatprep.subr.mxu0 %v1622
        %v1624 = vand.u32 %v1092, 4294901760
        %1625 = vmatpush1.msra.mxu0 %v1624
        %1626 = vmatprep.subr.mxu0 0.0
        %1627 = vmatpush1.msra.mxu0 0.0
        %1628 = vmatprep.subr.mxu0 0.0
        %1629 = vmatpush1.msra.mxu0 0.0
        %1630 = vmatprep.subr.mxu0 0.0
        %1631 = vmatpush1.msra.mxu0 0.0
        %1632 = vmatprep.subr.mxu0 0.0
        %1633 = vmatpush1.msra.mxu0 0.0
        %1634 = vmatprep.subr.mxu0 0.0
        %1635 = vmatpush1.msra.mxu0 0.0
        %1636 = vmatprep.subr.mxu0 0.0
        %1637 = vmatpush1.msra.mxu0 0.0
        %1638 = vmatprep.subr.mxu0 0.0
        %1639 = vmatpush1.msra.mxu0 0.0
        %1640 = vmatprep.subr.mxu0 0.0
        %1641 = vmatpush1.msra.mxu0 0.0
        %1642 = vmatprep.subr.mxu0 0.0
        %1643 = vmatpush1.msra.mxu0 0.0
        %1644 = vmatprep.subr.mxu0 0.0
        %1645 = vmatpush1.msra.mxu0 0.0
        %1646 = vmatprep.subr.mxu0 0.0
        %1647 = vmatpush1.msra.mxu0 0.0
        %1648 = vmatprep.subr.mxu0 0.0
        %1649 = vmatpush1.msra.mxu0 0.0
        %1650 = vmatprep.subr.mxu0 0.0
        %1651 = vmatpush1.msra.mxu0 0.0
        %1652 = vmatprep.subr.mxu0 0.0
        %1653 = vmatpush1.msra.mxu0 0.0
        %1654 = vmatprep.subr.mxu0 0.0
        %1655 = vmatpush1.msra.mxu0 0.0
        %1656 = vmatprep.subr.mxu0 0.0
        %1657 = vmatpush1.msra.mxu0 0.0
        %1658 = vmatprep.subr.mxu0 0.0
        %1659 = vmatpush1.msra.mxu0 0.0
        %1660 = vmatprep.subr.mxu0 0.0
        %1661 = vmatpush1.msra.mxu0 0.0
        %1662 = vmatprep.subr.mxu0 0.0
        %1663 = vmatpush1.msra.mxu0 0.0
        %1664 = vmatprep.subr.mxu0 0.0
        %1665 = vmatpush1.msra.mxu0 0.0
        %1666 = vmatprep.subr.mxu0 0.0
        %1667 = vmatpush1.msra.mxu0 0.0
        %1668 = vmatprep.subr.mxu0 0.0
        %1669 = vmatpush1.msra.mxu0 0.0
        %1670 = vmatprep.subr.mxu0 0.0
        %1671 = vmatpush1.msra.mxu0 0.0
        %1672 = vmatprep.subr.mxu0 0.0
        %1673 = vmatpush1.msra.mxu0 0.0
        %1674 = vmatprep.subr.mxu0 0.0
        %1675 = vmatpush1.msra.mxu0 0.0
        %1676 = vmatprep.subr.mxu0 0.0
        %1677 = vmatpush1.msra.mxu0 0.0
        %1678 = vmatprep.subr.mxu0 0.0
        %1679 = vmatpush1.msra.mxu0 0.0
        %1680 = vmatprep.subr.mxu0 0.0
        %1681 = vmatpush1.msra.mxu0 0.0
        %1682 = vmatprep.mubr.f32.mxu0 0.0
        %v1683 = vand.u32 %v1145, 4294901760
        %1684 = vmatmul.mubr.f32.gmra.mrb[0].mxu0 %v1683
        %v1685 = vpop.f32.mrb[0].mxu0
        %v1686 = vadd.f32 %v1606, %v1685
        %v1687 = vpop.f32.mrb[0].mxu0
        %v1688 = vadd.f32 %v1608, %v1687
        %1689 = vdwg.mxu0
        %v1690 = vmul.f32 %v1686, %v1139
        %v1691 = vmul.f32 %v1688, %v1141
        %vm1692 = vcmask 1043456
        %v1693 = vsel %vm1692, %v1690, -inf
        %v1694 = vrot.slane %v1693, 4
        %v1695 = vmax.f32 %v1693, %v1694
        %v1696 = vrot.slane %v1695, 2
        %v1697 = vmax.f32 %v1695, %v1696
        %v1698 = vrot.slane %v1697, 1
        %v1699 = vmax.f32 %v1697, %v1698
        %v1700 = vsel %vm1692, %v1691, -inf
        %v1701 = vrot.slane %v1700, 4
        %v1702 = vmax.f32 %v1700, %v1701
        %v1703 = vrot.slane %v1702, 2
        %v1704 = vmax.f32 %v1702, %v1703
        %v1705 = vrot.slane %v1704, 1
        %v1706 = vmax.f32 %v1704, %v1705
        %v1707 = vsub.f32 %v1690, %v1699
        %v1708 = vsub.f32 %v1691, %v1706
        %v1709 = vmul.f32 %v1707, 1.442695
        %v1710 = vpow.pop %v1709
        %v1711 = vmul.f32 %v1708, 1.442695
        %v1712 = vpow.pop %v1711
        %v1713 = vld [vmem:[%s4] sm:$0xf]
        %1715 = vset.pattern.permute.xlu0 0
        %1716 = vperm.xlu0 %1715, %v1713
        %v1717 = vpop.permute.xlu0 %1716
        %v1719 = vmul.f32 %v1710, %v1717
        %v1720 = vmul.f32 %v1712, %v1717
        %v1721 = vsel %vm1692, %v1719, 0.0
        %v1722 = vrot.slane %v1721, 4
        %v1723 = vadd.f32 %v1721, %v1722
        %v1724 = vrot.slane %v1723, 2
        %v1725 = vadd.f32 %v1723, %v1724
        %v1726 = vrot.slane %v1725, 1
        %v1727 = vadd.f32 %v1725, %v1726
        %v1728 = vsel %vm1692, %v1720, 0.0
        %v1729 = vrot.slane %v1728, 4
        %v1730 = vadd.f32 %v1728, %v1729
        %v1731 = vrot.slane %v1730, 2
        %v1732 = vadd.f32 %v1730, %v1731
        %v1733 = vrot.slane %v1732, 1
        %v1734 = vadd.f32 %v1732, %v1733
        %v1735 = vsel %vm1692, %v1710, 0.0
        %v1736 = vrot.slane %v1735, 4
        %v1737 = vadd.f32 %v1735, %v1736
        %v1738 = vrot.slane %v1737, 2
        %v1739 = vadd.f32 %v1737, %v1738
        %v1740 = vrot.slane %v1739, 1
        %v1741 = vadd.f32 %v1739, %v1740
        %v1742 = vsel %vm1692, %v1712, 0.0
        %v1743 = vrot.slane %v1742, 4
        %v1744 = vadd.f32 %v1742, %v1743
        %v1745 = vrot.slane %v1744, 2
        %v1746 = vadd.f32 %v1744, %v1745
        %v1747 = vrot.slane %v1746, 1
        %v1748 = vadd.f32 %v1746, %v1747
        %v1749 = vrcp.pop %v1741
        %v1750 = vmul.f32 %v1727, %v1749
        %v1751 = vrcp.pop %v1748
        %v1752 = vmul.f32 %v1734, %v1751
        %v1755 = vcombine.low %v1750, %v1752
        %v1757 = vunpack.c.l.s4 1966171168
        %v1758 = vunpack.c.0.s8 %v1757
        %v1759 = vlaneseq
        %v1760 = vshrl.u32 %v1759, 7
        %v1761 = vsub.s32 %v1758, %v1760
        %v1762 = vrot.slane %v1755, %v1761
        %v1764 = vunpack.c.l.s4 1966171168
        %v1765 = vunpack.c.0.s8 %v1764
        %v1766 = vlaneseq
        %v1767 = vshrl.u32 %v1766, 7
        %v1768 = vsub.s32 %v1765, %v1767
        %v1769 = vrot.slane %v1762, %v1768
        %v1771 = vlaneseq
        %vm1772 = vcmp.ge.s32.totalorder %v1771, 0
        %vm1773 = vcmp.lt.s32.totalorder %v1771, 256
        %vm1774 = vmand %vm1772, %vm1773
        %1775 = vst.msk [vmem:[%s242] sm:$0x3] %vm1774, %v1769
        %s1776 = sand.u32 %s140, 1
        %s1777 = scalar_lea.sflag [#allocation4], %s1776
        %s1778 = sand.u32 %s140, 1
        %s1779 = smul.addr %s1778, 2
        %s1780 = scalar_lea.vmem [#allocation5], %s1779
        // Predicated region
        $region45: #{tpu_custom_call.1} parent=39 // pred_check
          %p1781 = pneg %p150
        $region46: #{tpu_custom_call.1} parent=39 // pred_check_branch
          %1783 = sbr.rel (%p1781) target = $region48
        $region47: #{tpu_custom_call.1} parent=39 // pred_region
          %s1784 = smul.u32 2, %s22
          %s1786 = ssub.s32 32, 32
          %1787 = vsyncadd %s1777, %s1786
          %s1788 = smul.addr %s1784, 16
          %s1789 = scalar_lea.hbm %s5, %s1788
          %s1791 = sshll.u32 %s1780, 4
          %s1792 = int_to_ptr.vmem [resolvable:$true] %s1791
          %1794 = dma.vmem_to_hbm [thread:$0]  %s1792, 32, %s1789, %s1777
        $region48: #{tpu_custom_call.1} parent=39 // pred_fallthru
          _
      $region40: #{tpu_custom_call.1} parent=5 // pred_fallthru
        _
      %p1795 = scmp.le.s32.totalorder 2, %s17
      // Predicated region
      $region49: #{tpu_custom_call.1} parent=5 // pred_check
        %p1796 = pneg %p1795
      $region50: #{tpu_custom_call.1} parent=5 // pred_check_branch
        %1798 = sbr.rel (%p1796) target = $region52
      $region51: #{tpu_custom_call.1} parent=5 // pred_region
        %s1799 = ssub.s32 %s17, 2
        // Predicated region
        $region53: #{tpu_custom_call.1} parent=51 // pred_check
          %p1800 = pneg %p156
        $region54: #{tpu_custom_call.1} parent=51 // pred_check_branch
          %1802 = sbr.rel (%p1800) target = $region56
        $region55: #{tpu_custom_call.1} parent=51 // pred_region
          %s1803 = sand.u32 %s141, 1
          %s1804 = scalar_lea.sflag [#allocation4], %s1803
          %s1805 = sand.u32 %s141, 1
          %s1806 = smul.addr %s1805, 2
          %s1807 = scalar_lea.vmem [#allocation5], %s1806
          %1808 = dma.done %s1804, 32
        $region56: #{tpu_custom_call.1} parent=51 // pred_fallthru
          _
      $region52: #{tpu_custom_call.1} parent=5 // pred_fallthru
        _
    $region6: #{tpu_custom_call.1} parent=1 // loop_footer
      %s21 = sadd.s32 1, %s17
    $region7: #{tpu_custom_call.1} parent=1 // loop_footer_branch
      %16 = sbr.rel target = $region3
    $region8: #{tpu_custom_call.1} parent=1 // loop_exit
      _
    %1809 = vsyncpa [#allocation3], 1
    %s1810 = scalar_lea.sflag [#allocation3], 1
    %1811 = vsyncpa %s1810, 1
    %1812 = vsyncpa [#allocation4], 1
    %s1813 = scalar_lea.sflag [#allocation4], 1
    %1814 = vsyncpa %s1813, 1

</llo_original>
